<compile_context>
chip_gen: v5e
topology: v5e:2x2
jax: 0.10.0
libtpu: 0.0.40
codegen_flags: <defaults>
</compile_context>

<pallas_src>
import functools

import jax
import jax.numpy as jnp
from jax.experimental import pallas as pl
from jax.experimental.pallas import tpu as pltpu


def _round_up(v, m):
    return (v + m - 1) // m * m


def _round_feature(v):
    # Lane-dim padding for matmul outputs: 128 for small dims; >128 rounded to
    # 256 multiples to fill the 2x256x256 MXU on v6e/v7x.
    # TODO(synk): prefer 128-multiples on v5e (4x128x128 MXU).
    if v <= 128:
        return 128
    return _round_up(v, 256)


def _pick_tile(n_p):
    for t in (512, 256, 128):
        if n_p % t == 0:
            return t
    return 128


def _pad2(arr, rows, cols):
    r, c = arr.shape
    return jnp.pad(arr, ((0, rows - r), (0, cols - c)))


# ---------------------------------------------------------------------------
# Pallas kernel: one SAGE layer, row/K-tiled over the normalized adjacency
# ---------------------------------------------------------------------------
def _sage_layer_kernel(a_ref, xk_ref, xi_ref, wl_ref, wr_ref, b_ref, o_ref,
                       agg_ref, *, relu):
    k = pl.program_id(1)

    @pl.when(k == 0)
    def _():
        agg_ref[...] = jnp.zeros_like(agg_ref)

    # Mean-aggregation partial sum: A[row_tile, k_tile] @ X[k_tile, :]
    # (bf16 x bf16 -> f32 accumulator).
    agg_ref[...] += jnp.dot(a_ref[...], xk_ref[...],
                            preferred_element_type=jnp.float32)

    @pl.when(k == pl.num_programs(1) - 1)
    def _():
        agg = agg_ref[...].astype(xk_ref.dtype)        # bf16 for the MXU
        out = jnp.dot(agg, wl_ref[...], preferred_element_type=jnp.float32)
        out += jnp.dot(xi_ref[...], wr_ref[...],
                       preferred_element_type=jnp.float32)
        out += b_ref[...]                               # f32 bias add
        if relu:
            out = jnp.maximum(out, 0.0)
        o_ref[...] = out.astype(o_ref.dtype)


def _sage_layer(a_p, x_p, w_l, w_r, b, *, relu, out_dtype, tile_m, tile_k):
    n_p = a_p.shape[0]
    fin_p = x_p.shape[1]
    fout_p = w_l.shape[1]
    grid = (n_p // tile_m, n_p // tile_k)

    out_bytes = 2 if out_dtype == jnp.bfloat16 else 4

    flops = 2 * n_p * n_p * fin_p + 2 * 2 * n_p * fin_p * fout_p
    bytes_accessed = (
        2 * n_p * n_p                          # A (bf16)
        + 2 * n_p * fin_p * (grid[0] + 1)      # X k-tiles per row tile + root rows
        + 2 * 2 * fin_p * fout_p               # W_l, W_r (bf16)
        + 4 * fout_p                           # bias (f32)
        + out_bytes * n_p * fout_p             # output
    )

    # VMEM plan: double-buffered grid-varying tiles + resident weights + scratch.
    vmem_bytes = (
        2 * tile_m * tile_k * 2        # A tile (bf16), double-buffered
        + 2 * tile_k * fin_p * 2       # X k-tile (bf16), double-buffered
        + 2 * tile_m * fin_p * 2       # X row-tile (root term)
        + 2 * 2 * fin_p * fout_p * 2   # W_l + W_r (bf16)
        + 2 * fout_p * 4               # bias
        + 2 * tile_m * fout_p * out_bytes  # output tile
        + tile_m * fin_p * 4           # f32 aggregation scratch
    )
    vmem_limit = int(min(vmem_bytes + (8 << 20), 96 << 20))

    kernel = functools.partial(_sage_layer_kernel, relu=relu)

    return pl.pallas_call(
        kernel,
        out_shape=jax.ShapeDtypeStruct((n_p, fout_p), out_dtype),
        grid=grid,
        in_specs=[
            pl.BlockSpec((tile_m, tile_k), lambda i, k: (i, k)),   # A tile
            pl.BlockSpec((tile_k, fin_p), lambda i, k: (k, 0)),    # X rows (agg)
            pl.BlockSpec((tile_m, fin_p), lambda i, k: (i, 0)),    # X rows (root)
            pl.BlockSpec((fin_p, fout_p), lambda i, k: (0, 0)),    # W_l
            pl.BlockSpec((fin_p, fout_p), lambda i, k: (0, 0)),    # W_r
            pl.BlockSpec((1, fout_p), lambda i, k: (0, 0)),        # bias
        ],
        out_specs=pl.BlockSpec((tile_m, fout_p), lambda i, k: (i, 0)),
        scratch_shapes=[pltpu.VMEM((tile_m, fin_p), jnp.float32)],
        compiler_params=pltpu.CompilerParams(
            dimension_semantics=("parallel", "arbitrary"),
            vmem_limit_bytes=vmem_limit,
        ),
        cost_estimate=pl.CostEstimate(
            flops=int(flops), transcendentals=0,
            bytes_accessed=int(bytes_accessed),
        ),
    )(a_p, x_p, x_p, w_l, w_r, b)


# ---------------------------------------------------------------------------
# Parameter prep (done once, outside the forward pass) and forward wrapper
# ---------------------------------------------------------------------------
def prepare_params(params, in_channels, hidden_channels, out_channels):
    """Pad + cast weights once: W_l/W_r -> bf16 [Fin_p, Fout_p], bias f32 [1, Fout_p]."""
    (w_l1, w_r1, b1), (w_l2, w_r2, b2) = params
    fin_p = _round_up(in_channels, 128)
    hid_p = _round_feature(hidden_channels)
    fout_p = _round_feature(out_channels)
    l1 = (
        _pad2(w_l1, fin_p, hid_p).astype(jnp.bfloat16),
        _pad2(w_r1, fin_p, hid_p).astype(jnp.bfloat16),
        _pad2(b1, 1, hid_p).astype(jnp.float32),
    )
    l2 = (
        _pad2(w_l2, hid_p, fout_p).astype(jnp.bfloat16),
        _pad2(w_r2, hid_p, fout_p).astype(jnp.bfloat16),
        _pad2(b2, 1, fout_p).astype(jnp.float32),
    )
    return (l1, l2)


@functools.partial(jax.jit, static_argnames=("out_channels",))
def gnn_forward(prepared_params, x, a_norm, out_channels):
    """Two SAGE layers: relu(SAGEConv1(x)) -> SAGEConv2.

    prepared_params: output of prepare_params (padded, bf16 weights).
    x      : [N, Fin] f32 node features.
    a_norm : [N, N]   f32 row-normalized dense adjacency (mean aggregation).
    """
    (wl1, wr1, b1), (wl2, wr2, b2) = prepared_params
    n, _ = x.shape
    fin_p = wl1.shape[0]

    n_p = _round_up(n, 128)
    tile = _pick_tile(n_p)

    a_p = _pad2(a_norm, n_p, n_p).astype(jnp.bfloat16)
    x_p = _pad2(x, n_p, fin_p).astype(jnp.bfloat16)

    # Layer 1: SAGEConv(in -> hidden) + ReLU, hidden kept in bf16 for layer 2.
    h = _sage_layer(a_p, x_p, wl1, wr1, b1, relu=True,
                    out_dtype=jnp.bfloat16, tile_m=tile, tile_k=tile)

    # Layer 2: SAGEConv(hidden -> out), f32 output.
    out_p = _sage_layer(a_p, h, wl2, wr2, b2, relu=False,
                        out_dtype=jnp.float32, tile_m=tile, tile_k=tile)

    return out_p[:n, :out_channels]


# ---------------------------------------------------------------------------
# Glue: dense normalized adjacency from edge_index, parameter init
# ---------------------------------------------------------------------------
def build_mean_adjacency(edge_index, num_nodes):
    """edge_index: [2, E] int32 (row 0 = source, row 1 = target).
    A_norm[i, j] = multiplicity(j->i) / deg_in(i), matching PyG mean
    aggregation (isolated nodes -> all-zero row)."""
    src, tgt = edge_index[0], edge_index[1]
    a = jnp.zeros((num_nodes, num_nodes), jnp.float32)
    a = a.at[tgt, src].add(1.0)
    deg = a.sum(axis=1, keepdims=True)
    return jnp.where(deg > 0, a / jnp.maximum(deg, 1.0), 0.0)


def init_sage_params(key, in_channels, out_channels):
    k1, k2, k3 = jax.random.split(key, 3)
    scale = 1.0 / jnp.sqrt(jnp.float32(in_channels))
    # stored pre-transposed: [Fin, Fout]
    w_l = jax.random.uniform(k1, (in_channels, out_channels), jnp.float32, -scale, scale)
    w_r = jax.random.uniform(k2, (in_channels, out_channels), jnp.float32, -scale, scale)
    b = jax.random.uniform(k3, (1, out_channels), jnp.float32, -scale, scale)
    return w_l, w_r, b


# ---------------------------------------------------------------------------
# Pure-JAX f32 reference for a sanity check
# ---------------------------------------------------------------------------
def gnn_forward_ref(params, x, a_norm):
    (w_l1, w_r1, b1), (w_l2, w_r2, b2) = params
    h = jnp.maximum(a_norm @ x @ w_l1 + x @ w_r1 + b1, 0.0)
    return a_norm @ h @ w_l2 + h @ w_r2 + b2


if __name__ == "__main__":
    num_nodes = 64
    in_channels, hidden_channels, out_channels = 16, 32, 8
    num_edges = 256

    key = jax.random.PRNGKey(0)
    kx, ke, kp1, kp2 = jax.random.split(key, 4)

    # Deterministic synthetic node features and edge_index (no edges.csv).
    x = jax.random.normal(kx, (num_nodes, in_channels), jnp.float32)
    edge_index = jax.random.randint(ke, (2, num_edges), 0, num_nodes, jnp.int32)

    a_norm = build_mean_adjacency(edge_index, num_nodes)

    params = (
        init_sage_params(kp1, in_channels, hidden_channels),
        init_sage_params(kp2, hidden_channels, out_channels),
    )
    prepared = prepare_params(params, in_channels, hidden_channels, out_channels)

    out = gnn_forward(prepared, x, a_norm, out_channels)
    out = jax.block_until_ready(out)

    ref = gnn_forward_ref(params, x, a_norm)
    assert out.shape == (num_nodes, out_channels)
    # bf16 MXU operands -> relaxed tolerance vs f32 reference.
    assert jnp.allclose(out, ref, atol=3e-2, rtol=3e-2), (
        float(jnp.max(jnp.abs(out - ref)))
    )

    print("KERNEL_OK")
</pallas_src>

<mosaic_0001>
module attributes {stable_mosaic.version = 11 : i64} {
  func.func @_sage_layer_kernel(%arg0: i32, %arg1: i32, %arg2: memref<128x128xbf16, #tpu.memory_space<vmem>>, %arg3: memref<128x128xbf16, #tpu.memory_space<vmem>>, %arg4: memref<128x128xbf16, #tpu.memory_space<vmem>>, %arg5: memref<128x128xbf16, #tpu.memory_space<vmem>>, %arg6: memref<128x128xbf16, #tpu.memory_space<vmem>>, %arg7: memref<1x128xf32, #tpu.memory_space<vmem>>, %arg8: memref<128x128xbf16, #tpu.memory_space<vmem>>, %arg9: memref<128x128xf32, #tpu.memory_space<vmem>>) attributes {dimension_semantics = [#tpu.dimension_semantics<parallel>, #tpu.dimension_semantics<arbitrary>], iteration_bounds = array<i64: 1, 1>, scalar_prefetch = 0 : i64, scratch_operands = 1 : i64, tpu.core_type = #tpu.core_type<tc>, window_params = [{transform_indices = @transform_0, window_bounds = array<i64: 128, 128>}, {transform_indices = @transform_1, window_bounds = array<i64: 128, 128>}, {transform_indices = @transform_2, window_bounds = array<i64: 128, 128>}, {pipeline_mode = #tpu.pipeline_mode<synchronous>, transform_indices = @transform_3, window_bounds = array<i64: 128, 128>}, {pipeline_mode = #tpu.pipeline_mode<synchronous>, transform_indices = @transform_4, window_bounds = array<i64: 128, 128>}, {pipeline_mode = #tpu.pipeline_mode<synchronous>, transform_indices = @transform_5, window_bounds = array<i64: 1, 128>}, {transform_indices = @transform_6, window_bounds = array<i64: 128, 128>}]} {
    %c0_i32 = arith.constant 0 : i32
    %0 = arith.cmpi eq, %arg1, %c0_i32 : i32
    %1 = arith.extui %0 : i1 to i32
    %c0_i32_0 = arith.constant 0 : i32
    %2 = arith.cmpi ne, %1, %c0_i32_0 : i32
    scf.if %2 {
      %cst_10 = arith.constant 0.000000e+00 : f32
      %12 = vector.broadcast %cst_10 : f32 to vector<128x128xf32>
      %c0_11 = arith.constant 0 : index
      %c0_12 = arith.constant 0 : index
      %13 = vector.load %arg9[%c0_11, %c0_12] : memref<128x128xf32, #tpu.memory_space<vmem>>, vector<128x128xf32>
      tpu.vector_store %arg9[%c0_11, %c0_12], %12 {strides = array<i32>} : memref<128x128xf32, #tpu.memory_space<vmem>>, vector<128x128xf32>,
    } else {
    }
    %c0 = arith.constant 0 : index
    %c0_1 = arith.constant 0 : index
    %3 = vector.load %arg9[%c0, %c0_1] : memref<128x128xf32, #tpu.memory_space<vmem>>, vector<128x128xf32>
    %c0_2 = arith.constant 0 : index
    %c0_3 = arith.constant 0 : index
    %4 = vector.load %arg2[%c0_2, %c0_3] : memref<128x128xbf16, #tpu.memory_space<vmem>>, vector<128x128xbf16>
    %c0_4 = arith.constant 0 : index
    %c0_5 = arith.constant 0 : index
    %5 = vector.load %arg3[%c0_4, %c0_5] : memref<128x128xbf16, #tpu.memory_space<vmem>>, vector<128x128xbf16>
    %cst = arith.constant dense<0.000000e+00> : vector<128x128xf32>
    %6 = tpu.matmul %4, %5, %cst {dimension_numbers = #tpu.dot_dimension_numbers<[1], [0], [0], [1], [0, 0, 1, 1], [], []>} : vector<128x128xbf16>, vector<128x128xbf16>, vector<128x128xf32> -> vector<128x128xf32>
    %7 = arith.addf %3, %6 : vector<128x128xf32>
    %c0_6 = arith.constant 0 : index
    %c0_7 = arith.constant 0 : index
    %8 = vector.load %arg9[%c0_6, %c0_7] : memref<128x128xf32, #tpu.memory_space<vmem>>, vector<128x128xf32>
    tpu.vector_store %arg9[%c0_6, %c0_7], %7 {strides = array<i32>} : memref<128x128xf32, #tpu.memory_space<vmem>>, vector<128x128xf32>,
    %c0_i32_8 = arith.constant 0 : i32
    %9 = arith.cmpi eq, %arg1, %c0_i32_8 : i32
    %10 = arith.extui %9 : i1 to i32
    %c0_i32_9 = arith.constant 0 : i32
    %11 = arith.cmpi ne, %10, %c0_i32_9 : i32
    scf.if %11 {
      %c0_10 = arith.constant 0 : index
      %c0_11 = arith.constant 0 : index
      %12 = vector.load %arg9[%c0_10, %c0_11] : memref<128x128xf32, #tpu.memory_space<vmem>>, vector<128x128xf32>
      %13 = arith.truncf %12 : vector<128x128xf32> to vector<128x128xbf16>
      %c0_12 = arith.constant 0 : index
      %c0_13 = arith.constant 0 : index
      %14 = vector.load %arg5[%c0_12, %c0_13] : memref<128x128xbf16, #tpu.memory_space<vmem>>, vector<128x128xbf16>
      %cst_14 = arith.constant dense<0.000000e+00> : vector<128x128xf32>
      %15 = tpu.matmul %13, %14, %cst_14 {dimension_numbers = #tpu.dot_dimension_numbers<[1], [0], [0], [1], [0, 0, 1, 1], [], []>} : vector<128x128xbf16>, vector<128x128xbf16>, vector<128x128xf32> -> vector<128x128xf32>
      %c0_15 = arith.constant 0 : index
      %c0_16 = arith.constant 0 : index
      %16 = vector.load %arg4[%c0_15, %c0_16] : memref<128x128xbf16, #tpu.memory_space<vmem>>, vector<128x128xbf16>
      %c0_17 = arith.constant 0 : index
      %c0_18 = arith.constant 0 : index
      %17 = vector.load %arg6[%c0_17, %c0_18] : memref<128x128xbf16, #tpu.memory_space<vmem>>, vector<128x128xbf16>
      %cst_19 = arith.constant dense<0.000000e+00> : vector<128x128xf32>
      %18 = tpu.matmul %16, %17, %cst_19 {dimension_numbers = #tpu.dot_dimension_numbers<[1], [0], [0], [1], [0, 0, 1, 1], [], []>} : vector<128x128xbf16>, vector<128x128xbf16>, vector<128x128xf32> -> vector<128x128xf32>
      %19 = arith.addf %15, %18 : vector<128x128xf32>
      %c0_20 = arith.constant 0 : index
      %c0_21 = arith.constant 0 : index
      %20 = vector.load %arg7[%c0_20, %c0_21] : memref<1x128xf32, #tpu.memory_space<vmem>>, vector<1x128xf32>
      %21 = vector.broadcast %20 : vector<1x128xf32> to vector<128x128xf32>
      %22 = arith.addf %19, %21 : vector<128x128xf32>
      %cst_22 = arith.constant 0.000000e+00 : f32
      %23 = vector.broadcast %cst_22 : f32 to vector<128x128xf32>
      %24 = arith.maximumf %22, %23 : vector<128x128xf32>
      %25 = arith.truncf %24 : vector<128x128xf32> to vector<128x128xbf16>
      %c0_23 = arith.constant 0 : index
      %c0_24 = arith.constant 0 : index
      %26 = vector.load %arg8[%c0_23, %c0_24] : memref<128x128xbf16, #tpu.memory_space<vmem>>, vector<128x128xbf16>
      tpu.vector_store %arg8[%c0_23, %c0_24], %25 {strides = array<i32>} : memref<128x128xbf16, #tpu.memory_space<vmem>>, vector<128x128xbf16>,
    } else {
    }
    return
  }
  func.func @transform_0(%arg0: i32, %arg1: i32) -> (i32, i32) {
    %c0_i32 = arith.constant 0 : i32
    return %arg0, %arg1 : i32, i32
  }
  func.func @transform_1(%arg0: i32, %arg1: i32) -> (i32, i32) {
    %c0_i32 = arith.constant 0 : i32
    %c0_i32_0 = arith.constant 0 : i32
    return %arg1, %c0_i32 : i32, i32
  }
  func.func @transform_2(%arg0: i32, %arg1: i32) -> (i32, i32) {
    %c0_i32 = arith.constant 0 : i32
    %c0_i32_0 = arith.constant 0 : i32
    return %arg0, %c0_i32 : i32, i32
  }
  func.func @transform_3(%arg0: i32, %arg1: i32) -> (i32, i32) {
    %c0_i32 = arith.constant 0 : i32
    %c0_i32_0 = arith.constant 0 : i32
    %c0_i32_1 = arith.constant 0 : i32
    return %c0_i32, %c0_i32_0 : i32, i32
  }
  func.func @transform_4(%arg0: i32, %arg1: i32) -> (i32, i32) {
    %c0_i32 = arith.constant 0 : i32
    %c0_i32_0 = arith.constant 0 : i32
    %c0_i32_1 = arith.constant 0 : i32
    return %c0_i32, %c0_i32_0 : i32, i32
  }
  func.func @transform_5(%arg0: i32, %arg1: i32) -> (i32, i32) {
    %c0_i32 = arith.constant 0 : i32
    %c0_i32_0 = arith.constant 0 : i32
    %c0_i32_1 = arith.constant 0 : i32
    return %c0_i32, %c0_i32_0 : i32, i32
  }
  func.func @transform_6(%arg0: i32, %arg1: i32) -> (i32, i32) {
    %c0_i32 = arith.constant 0 : i32
    %c0_i32_0 = arith.constant 0 : i32
    return %arg0, %c0_i32 : i32, i32
  }
}

module attributes {stable_mosaic.version = 11 : i64} {
  func.func @_sage_layer_kernel(%arg0: i32, %arg1: i32, %arg2: memref<128x128xbf16, #tpu.memory_space<vmem>>, %arg3: memref<128x128xbf16, #tpu.memory_space<vmem>>, %arg4: memref<128x128xbf16, #tpu.memory_space<vmem>>, %arg5: memref<128x128xbf16, #tpu.memory_space<vmem>>, %arg6: memref<128x128xbf16, #tpu.memory_space<vmem>>, %arg7: memref<1x128xf32, #tpu.memory_space<vmem>>, %arg8: memref<128x128xf32, #tpu.memory_space<vmem>>, %arg9: memref<128x128xf32, #tpu.memory_space<vmem>>) attributes {dimension_semantics = [#tpu.dimension_semantics<parallel>, #tpu.dimension_semantics<arbitrary>], iteration_bounds = array<i64: 1, 1>, scalar_prefetch = 0 : i64, scratch_operands = 1 : i64, tpu.core_type = #tpu.core_type<tc>, window_params = [{transform_indices = @transform_0, window_bounds = array<i64: 128, 128>}, {transform_indices = @transform_1, window_bounds = array<i64: 128, 128>}, {transform_indices = @transform_2, window_bounds = array<i64: 128, 128>}, {pipeline_mode = #tpu.pipeline_mode<synchronous>, transform_indices = @transform_3, window_bounds = array<i64: 128, 128>}, {pipeline_mode = #tpu.pipeline_mode<synchronous>, transform_indices = @transform_4, window_bounds = array<i64: 128, 128>}, {pipeline_mode = #tpu.pipeline_mode<synchronous>, transform_indices = @transform_5, window_bounds = array<i64: 1, 128>}, {transform_indices = @transform_6, window_bounds = array<i64: 128, 128>}]} {
    %c0_i32 = arith.constant 0 : i32
    %0 = arith.cmpi eq, %arg1, %c0_i32 : i32
    %1 = arith.extui %0 : i1 to i32
    %c0_i32_0 = arith.constant 0 : i32
    %2 = arith.cmpi ne, %1, %c0_i32_0 : i32
    scf.if %2 {
      %cst_10 = arith.constant 0.000000e+00 : f32
      %12 = vector.broadcast %cst_10 : f32 to vector<128x128xf32>
      %c0_11 = arith.constant 0 : index
      %c0_12 = arith.constant 0 : index
      %13 = vector.load %arg9[%c0_11, %c0_12] : memref<128x128xf32, #tpu.memory_space<vmem>>, vector<128x128xf32>
      tpu.vector_store %arg9[%c0_11, %c0_12], %12 {strides = array<i32>} : memref<128x128xf32, #tpu.memory_space<vmem>>, vector<128x128xf32>,
    } else {
    }
    %c0 = arith.constant 0 : index
    %c0_1 = arith.constant 0 : index
    %3 = vector.load %arg9[%c0, %c0_1] : memref<128x128xf32, #tpu.memory_space<vmem>>, vector<128x128xf32>
    %c0_2 = arith.constant 0 : index
    %c0_3 = arith.constant 0 : index
    %4 = vector.load %arg2[%c0_2, %c0_3] : memref<128x128xbf16, #tpu.memory_space<vmem>>, vector<128x128xbf16>
    %c0_4 = arith.constant 0 : index
    %c0_5 = arith.constant 0 : index
    %5 = vector.load %arg3[%c0_4, %c0_5] : memref<128x128xbf16, #tpu.memory_space<vmem>>, vector<128x128xbf16>
    %cst = arith.constant dense<0.000000e+00> : vector<128x128xf32>
    %6 = tpu.matmul %4, %5, %cst {dimension_numbers = #tpu.dot_dimension_numbers<[1], [0], [0], [1], [0, 0, 1, 1], [], []>} : vector<128x128xbf16>, vector<128x128xbf16>, vector<128x128xf32> -> vector<128x128xf32>
    %7 = arith.addf %3, %6 : vector<128x128xf32>
    %c0_6 = arith.constant 0 : index
    %c0_7 = arith.constant 0 : index
    %8 = vector.load %arg9[%c0_6, %c0_7] : memref<128x128xf32, #tpu.memory_space<vmem>>, vector<128x128xf32>
    tpu.vector_store %arg9[%c0_6, %c0_7], %7 {strides = array<i32>} : memref<128x128xf32, #tpu.memory_space<vmem>>, vector<128x128xf32>,
    %c0_i32_8 = arith.constant 0 : i32
    %9 = arith.cmpi eq, %arg1, %c0_i32_8 : i32
    %10 = arith.extui %9 : i1 to i32
    %c0_i32_9 = arith.constant 0 : i32
    %11 = arith.cmpi ne, %10, %c0_i32_9 : i32
    scf.if %11 {
      %c0_10 = arith.constant 0 : index
      %c0_11 = arith.constant 0 : index
      %12 = vector.load %arg9[%c0_10, %c0_11] : memref<128x128xf32, #tpu.memory_space<vmem>>, vector<128x128xf32>
      %13 = arith.truncf %12 : vector<128x128xf32> to vector<128x128xbf16>
      %c0_12 = arith.constant 0 : index
      %c0_13 = arith.constant 0 : index
      %14 = vector.load %arg5[%c0_12, %c0_13] : memref<128x128xbf16, #tpu.memory_space<vmem>>, vector<128x128xbf16>
      %cst_14 = arith.constant dense<0.000000e+00> : vector<128x128xf32>
      %15 = tpu.matmul %13, %14, %cst_14 {dimension_numbers = #tpu.dot_dimension_numbers<[1], [0], [0], [1], [0, 0, 1, 1], [], []>} : vector<128x128xbf16>, vector<128x128xbf16>, vector<128x128xf32> -> vector<128x128xf32>
      %c0_15 = arith.constant 0 : index
      %c0_16 = arith.constant 0 : index
      %16 = vector.load %arg4[%c0_15, %c0_16] : memref<128x128xbf16, #tpu.memory_space<vmem>>, vector<128x128xbf16>
      %c0_17 = arith.constant 0 : index
      %c0_18 = arith.constant 0 : index
      %17 = vector.load %arg6[%c0_17, %c0_18] : memref<128x128xbf16, #tpu.memory_space<vmem>>, vector<128x128xbf16>
      %cst_19 = arith.constant dense<0.000000e+00> : vector<128x128xf32>
      %18 = tpu.matmul %16, %17, %cst_19 {dimension_numbers = #tpu.dot_dimension_numbers<[1], [0], [0], [1], [0, 0, 1, 1], [], []>} : vector<128x128xbf16>, vector<128x128xbf16>, vector<128x128xf32> -> vector<128x128xf32>
      %19 = arith.addf %15, %18 : vector<128x128xf32>
      %c0_20 = arith.constant 0 : index
      %c0_21 = arith.constant 0 : index
      %20 = vector.load %arg7[%c0_20, %c0_21] : memref<1x128xf32, #tpu.memory_space<vmem>>, vector<1x128xf32>
      %21 = vector.broadcast %20 : vector<1x128xf32> to vector<128x128xf32>
      %22 = arith.addf %19, %21 : vector<128x128xf32>
      %c0_22 = arith.constant 0 : index
      %c0_23 = arith.constant 0 : index
      %23 = vector.load %arg8[%c0_22, %c0_23] : memref<128x128xf32, #tpu.memory_space<vmem>>, vector<128x128xf32>
      tpu.vector_store %arg8[%c0_22, %c0_23], %22 {strides = array<i32>} : memref<128x128xf32, #tpu.memory_space<vmem>>, vector<128x128xf32>,
    } else {
    }
    return
  }
  func.func @transform_0(%arg0: i32, %arg1: i32) -> (i32, i32) {
    %c0_i32 = arith.constant 0 : i32
    return %arg0, %arg1 : i32, i32
  }
  func.func @transform_1(%arg0: i32, %arg1: i32) -> (i32, i32) {
    %c0_i32 = arith.constant 0 : i32
    %c0_i32_0 = arith.constant 0 : i32
    return %arg1, %c0_i32 : i32, i32
  }
  func.func @transform_2(%arg0: i32, %arg1: i32) -> (i32, i32) {
    %c0_i32 = arith.constant 0 : i32
    %c0_i32_0 = arith.constant 0 : i32
    return %arg0, %c0_i32 : i32, i32
  }
  func.func @transform_3(%arg0: i32, %arg1: i32) -> (i32, i32) {
    %c0_i32 = arith.constant 0 : i32
    %c0_i32_0 = arith.constant 0 : i32
    %c0_i32_1 = arith.constant 0 : i32
    return %c0_i32, %c0_i32_0 : i32, i32
  }
  func.func @transform_4(%arg0: i32, %arg1: i32) -> (i32, i32) {
    %c0_i32 = arith.constant 0 : i32
    %c0_i32_0 = arith.constant 0 : i32
    %c0_i32_1 = arith.constant 0 : i32
    return %c0_i32, %c0_i32_0 : i32, i32
  }
  func.func @transform_5(%arg0: i32, %arg1: i32) -> (i32, i32) {
    %c0_i32 = arith.constant 0 : i32
    %c0_i32_0 = arith.constant 0 : i32
    %c0_i32_1 = arith.constant 0 : i32
    return %c0_i32, %c0_i32_0 : i32, i32
  }
  func.func @transform_6(%arg0: i32, %arg1: i32) -> (i32, i32) {
    %c0_i32 = arith.constant 0 : i32
    %c0_i32_0 = arith.constant 0 : i32
    return %arg0, %c0_i32 : i32, i32
  }
}

</mosaic_0001>

<llo_original>
// kernel: gnn_forward.3
$region0: #{gnn_forward.3}
  #allocation0 [shape = 'u32[]', space=smem, size = 0x4, offset = 0x4, fixed_abs, tag = 'smem constant byte address 0x4 - core index']
  #allocation1 [shape = 'u32[72,128]{1,0:T(1,128)}', space=vmem, size = 0x9000, scoped, tag = 'internal scratch']
  #allocation2 [shape = 'f32[128,128]{1,0:T(8,128)}', space=vmem, size = 0x10000, scoped, tag = 'scratch operand']
  %s0 = inlined_call_operand.vmem [shape: bf16[128,128], index: 0, kind: input, shape index: {}]
  %s1 = inlined_call_operand.vmem [shape: bf16[128,128], index: 1, kind: input, shape index: {}, may-alias: {1,2}]
  %s2 = inlined_call_operand.vmem [shape: bf16[128,128], index: 2, kind: input, shape index: {}, may-alias: {1,2}]
  %s3 = inlined_call_operand.vmem [shape: bf16[128,128], index: 3, kind: input, shape index: {}]
  %s4 = inlined_call_operand.vmem [shape: bf16[128,128], index: 4, kind: input, shape index: {}]
  %s5 = inlined_call_operand.vmem [shape: f32[1,128], index: 5, kind: input, shape index: {}]
  %s6 = inlined_call_operand.vmem [shape: f32[128,128], index: 6, kind: output, shape index: {}]
  %s7 = sld [smem:[#allocation0]]
  $region42: #{gnn_forward.3} parent=0
    _
  %s9 = ssub.s32 1, %s7
  %s10 = scalar_select 0, %s9, %s7
  // Predicated region
  $region2: #{gnn_forward.3} parent=0 // pred_check
    _
  $region3: #{gnn_forward.3} parent=0 // pred_check_branch
    %12 = sbr.rel (0) target = $region5
  $region4: #{gnn_forward.3} parent=0 // pred_region
    _
  $region5: #{gnn_forward.3} parent=0 // pred_fallthru
    _
  // Predicated region
  $region6: #{gnn_forward.3} parent=0 // pred_check
    _
  $region7: #{gnn_forward.3} parent=0 // pred_check_branch
    %14 = sbr.rel (0) target = $region9
  $region8: #{gnn_forward.3} parent=0 // pred_region
    _
  $region9: #{gnn_forward.3} parent=0 // pred_fallthru
    _
  // Predicated region
  $region10: #{gnn_forward.3} parent=0 // pred_check
    _
  $region11: #{gnn_forward.3} parent=0 // pred_check_branch
    %16 = sbr.rel (0) target = $region13
  $region12: #{gnn_forward.3} parent=0 // pred_region
    _
  $region13: #{gnn_forward.3} parent=0 // pred_fallthru
    _
  // Predicated region
  $region14: #{gnn_forward.3} parent=0 // pred_check
    _
  $region15: #{gnn_forward.3} parent=0 // pred_check_branch
    %18 = sbr.rel (0) target = $region17
  $region16: #{gnn_forward.3} parent=0 // pred_region
    _
  $region17: #{gnn_forward.3} parent=0 // pred_fallthru
    _
  // Predicated region
  $region18: #{gnn_forward.3} parent=0 // pred_check
    _
  $region19: #{gnn_forward.3} parent=0 // pred_check_branch
    %20 = sbr.rel (0) target = $region21
  $region20: #{gnn_forward.3} parent=0 // pred_region
    _
  $region21: #{gnn_forward.3} parent=0 // pred_fallthru
    _
  // Predicated region
  $region22: #{gnn_forward.3} parent=0 // pred_check
    _
  $region23: #{gnn_forward.3} parent=0 // pred_check_branch
    %22 = sbr.rel (0) target = $region25
  $region24: #{gnn_forward.3} parent=0 // pred_region
    _
  $region25: #{gnn_forward.3} parent=0 // pred_fallthru
    _
  %p23 = scmp.eq.s32.totalorder 0, 0
  // Predicated region
  $region26: #{gnn_forward.3} parent=0 // pred_check
    %p24 = pneg %p23
  $region27: #{gnn_forward.3} parent=0 // pred_check_branch
    %26 = sbr.rel (%p24) target = $region29
  $region28: #{gnn_forward.3} parent=0 // pred_region
    %27 = vst [vmem:[#allocation2] sm:$0xff] 0.0
    %28 = vst [vmem:[#allocation2 + $0x8] sm:$0xff] 0.0
    %29 = vst [vmem:[#allocation2 + $0x10] sm:$0xff] 0.0
    %30 = vst [vmem:[#allocation2 + $0x18] sm:$0xff] 0.0
    %31 = vst [vmem:[#allocation2 + $0x20] sm:$0xff] 0.0
    %32 = vst [vmem:[#allocation2 + $0x28] sm:$0xff] 0.0
    %33 = vst [vmem:[#allocation2 + $0x30] sm:$0xff] 0.0
    %34 = vst [vmem:[#allocation2 + $0x38] sm:$0xff] 0.0
    %35 = vst [vmem:[#allocation2 + $0x40] sm:$0xff] 0.0
    %36 = vst [vmem:[#allocation2 + $0x48] sm:$0xff] 0.0
    %37 = vst [vmem:[#allocation2 + $0x50] sm:$0xff] 0.0
    %38 = vst [vmem:[#allocation2 + $0x58] sm:$0xff] 0.0
    %39 = vst [vmem:[#allocation2 + $0x60] sm:$0xff] 0.0
    %40 = vst [vmem:[#allocation2 + $0x68] sm:$0xff] 0.0
    %41 = vst [vmem:[#allocation2 + $0x70] sm:$0xff] 0.0
    %42 = vst [vmem:[#allocation2 + $0x78] sm:$0xff] 0.0
  $region29: #{gnn_forward.3} parent=0 // pred_fallthru
    _
  %v43 = vld [vmem:[#allocation2] sm:$0xff]
  %v44 = vld [vmem:[#allocation2 + $0x8] sm:$0xff]
  %v45 = vld [vmem:[#allocation2 + $0x10] sm:$0xff]
  %v46 = vld [vmem:[#allocation2 + $0x18] sm:$0xff]
  %v47 = vld [vmem:[#allocation2 + $0x20] sm:$0xff]
  %v48 = vld [vmem:[#allocation2 + $0x28] sm:$0xff]
  %v49 = vld [vmem:[#allocation2 + $0x30] sm:$0xff]
  %v50 = vld [vmem:[#allocation2 + $0x38] sm:$0xff]
  %v51 = vld [vmem:[#allocation2 + $0x40] sm:$0xff]
  %v52 = vld [vmem:[#allocation2 + $0x48] sm:$0xff]
  %v53 = vld [vmem:[#allocation2 + $0x50] sm:$0xff]
  %v54 = vld [vmem:[#allocation2 + $0x58] sm:$0xff]
  %v55 = vld [vmem:[#allocation2 + $0x60] sm:$0xff]
  %v56 = vld [vmem:[#allocation2 + $0x68] sm:$0xff]
  %v57 = vld [vmem:[#allocation2 + $0x70] sm:$0xff]
  %v58 = vld [vmem:[#allocation2 + $0x78] sm:$0xff]
  %v59 = vld [vmem:[%s0] sm:$0xf]
  %v60 = vld [vmem:[%s0 + $0x4] sm:$0xf]
  %v61 = vld [vmem:[%s0 + $0x8] sm:$0xf]
  %v62 = vld [vmem:[%s0 + $0xc] sm:$0xf]
  %v63 = vld [vmem:[%s0 + $0x10] sm:$0xf]
  %v64 = vld [vmem:[%s0 + $0x14] sm:$0xf]
  %v65 = vld [vmem:[%s0 + $0x18] sm:$0xf]
  %v66 = vld [vmem:[%s0 + $0x1c] sm:$0xf]
  %v67 = vld [vmem:[%s0 + $0x20] sm:$0xf]
  %v68 = vld [vmem:[%s0 + $0x24] sm:$0xf]
  %v69 = vld [vmem:[%s0 + $0x28] sm:$0xf]
  %v70 = vld [vmem:[%s0 + $0x2c] sm:$0xf]
  %v71 = vld [vmem:[%s0 + $0x30] sm:$0xf]
  %v72 = vld [vmem:[%s0 + $0x34] sm:$0xf]
  %v73 = vld [vmem:[%s0 + $0x38] sm:$0xf]
  %v74 = vld [vmem:[%s0 + $0x3c] sm:$0xf]
  %v75 = vld [vmem:[%s1] sm:$0xf]
  %v76 = vld [vmem:[%s1 + $0x4] sm:$0xf]
  %v77 = vld [vmem:[%s1 + $0x8] sm:$0xf]
  %v78 = vld [vmem:[%s1 + $0xc] sm:$0xf]
  %v79 = vld [vmem:[%s1 + $0x10] sm:$0xf]
  %v80 = vld [vmem:[%s1 + $0x14] sm:$0xf]
  %v81 = vld [vmem:[%s1 + $0x18] sm:$0xf]
  %v82 = vld [vmem:[%s1 + $0x1c] sm:$0xf]
  %v83 = vld [vmem:[%s1 + $0x20] sm:$0xf]
  %v84 = vld [vmem:[%s1 + $0x24] sm:$0xf]
  %v85 = vld [vmem:[%s1 + $0x28] sm:$0xf]
  %v86 = vld [vmem:[%s1 + $0x2c] sm:$0xf]
  %v87 = vld [vmem:[%s1 + $0x30] sm:$0xf]
  %v88 = vld [vmem:[%s1 + $0x34] sm:$0xf]
  %v89 = vld [vmem:[%s1 + $0x38] sm:$0xf]
  %v90 = vld [vmem:[%s1 + $0x3c] sm:$0xf]
  %v107 = vunpack.c.l.b16 %v59
  %v108 = vunpack.c.l.b16 %v60
  %v109 = vunpack.c.l.b16 %v61
  %v110 = vunpack.c.l.b16 %v62
  %v111 = vunpack.c.l.b16 %v63
  %v112 = vunpack.c.l.b16 %v64
  %v113 = vunpack.c.l.b16 %v65
  %v114 = vunpack.c.l.b16 %v66
  %v115 = vunpack.c.l.b16 %v67
  %v116 = vunpack.c.l.b16 %v68
  %v117 = vunpack.c.l.b16 %v69
  %v118 = vunpack.c.l.b16 %v70
  %v119 = vunpack.c.l.b16 %v71
  %v120 = vunpack.c.l.b16 %v72
  %v121 = vunpack.c.l.b16 %v73
  %v122 = vunpack.c.l.b16 %v74
  %v123 = vpack.c.b16 %v108, %v107
  %v124 = vpack.c.b16 %v110, %v109
  %v125 = vpack.c.b16 %v112, %v111
  %v126 = vpack.c.b16 %v114, %v113
  %v127 = vpack.c.b16 %v116, %v115
  %v128 = vpack.c.b16 %v118, %v117
  %v129 = vpack.c.b16 %v120, %v119
  %v130 = vpack.c.b16 %v122, %v121
  %v155 = vunpack.c.l.b16 %v75
  %v156 = vunpack.c.l.b16 %v76
  %v157 = vunpack.c.l.b16 %v77
  %v158 = vunpack.c.l.b16 %v78
  %v159 = vunpack.c.l.b16 %v79
  %v160 = vunpack.c.l.b16 %v80
  %v161 = vunpack.c.l.b16 %v81
  %v162 = vunpack.c.l.b16 %v82
  %v163 = vunpack.c.l.b16 %v83
  %v164 = vunpack.c.l.b16 %v84
  %v165 = vunpack.c.l.b16 %v85
  %v166 = vunpack.c.l.b16 %v86
  %v167 = vunpack.c.l.b16 %v87
  %v168 = vunpack.c.l.b16 %v88
  %v169 = vunpack.c.l.b16 %v89
  %v170 = vunpack.c.l.b16 %v90
  %v171 = vpack.c.b16 %v156, %v155
  %v172 = vpack.c.b16 %v158, %v157
  %v173 = vpack.c.b16 %v160, %v159
  %v174 = vpack.c.b16 %v162, %v161
  %v175 = vpack.c.b16 %v164, %v163
  %v176 = vpack.c.b16 %v166, %v165
  %v177 = vpack.c.b16 %v168, %v167
  %v178 = vpack.c.b16 %v170, %v169
  %187 = vmatpush.bf16.msra.mxu0 %v178
  %188 = vmatpush.bf16.msra.mxu0 %v177
  %189 = vmatpush.bf16.msra.mxu0 %v176
  %190 = vmatpush.bf16.msra.mxu0 %v175
  %191 = vmatpush.bf16.msra.mxu0 %v174
  %192 = vmatpush.bf16.msra.mxu0 %v173
  %193 = vmatpush.bf16.msra.mxu0 %v172
  %194 = vmatpush.bf16.msra.mxu0 %v171
  %195 = vmatmul.bf16.gmra.mxu0 %v123
  %v196 = vpop.f32.mrf.mxu0
  %v197 = vadd.f32 0.0, %v196
  %v198 = vpop.f32.mrf.mxu0
  %v199 = vadd.f32 0.0, %v198
  %200 = vmatmul.bf16.gmra.mxu0 %v124
  %v201 = vpop.f32.mrf.mxu0
  %v202 = vadd.f32 0.0, %v201
  %v203 = vpop.f32.mrf.mxu0
  %v204 = vadd.f32 0.0, %v203
  %205 = vmatmul.bf16.gmra.mxu0 %v125
  %v206 = vpop.f32.mrf.mxu0
  %v207 = vadd.f32 0.0, %v206
  %v208 = vpop.f32.mrf.mxu0
  %v209 = vadd.f32 0.0, %v208
  %210 = vmatmul.bf16.gmra.mxu0 %v126
  %v211 = vpop.f32.mrf.mxu0
  %v212 = vadd.f32 0.0, %v211
  %v213 = vpop.f32.mrf.mxu0
  %v214 = vadd.f32 0.0, %v213
  %215 = vmatmul.bf16.gmra.mxu0 %v127
  %v216 = vpop.f32.mrf.mxu0
  %v217 = vadd.f32 0.0, %v216
  %v218 = vpop.f32.mrf.mxu0
  %v219 = vadd.f32 0.0, %v218
  %220 = vmatmul.bf16.gmra.mxu0 %v128
  %v221 = vpop.f32.mrf.mxu0
  %v222 = vadd.f32 0.0, %v221
  %v223 = vpop.f32.mrf.mxu0
  %v224 = vadd.f32 0.0, %v223
  %225 = vmatmul.bf16.gmra.mxu0 %v129
  %v226 = vpop.f32.mrf.mxu0
  %v227 = vadd.f32 0.0, %v226
  %v228 = vpop.f32.mrf.mxu0
  %v229 = vadd.f32 0.0, %v228
  %230 = vmatmul.bf16.gmra.mxu0 %v130
  %v231 = vpop.f32.mrf.mxu0
  %v232 = vadd.f32 0.0, %v231
  %v233 = vpop.f32.mrf.mxu0
  %v234 = vadd.f32 0.0, %v233
  %235 = vdwg.mxu0
  %v236 = vadd.f32 %v43, %v197
  %v237 = vadd.f32 %v44, %v199
  %v238 = vadd.f32 %v45, %v202
  %v239 = vadd.f32 %v46, %v204
  %v240 = vadd.f32 %v47, %v207
  %v241 = vadd.f32 %v48, %v209
  %v242 = vadd.f32 %v49, %v212
  %v243 = vadd.f32 %v50, %v214
  %v244 = vadd.f32 %v51, %v217
  %v245 = vadd.f32 %v52, %v219
  %v246 = vadd.f32 %v53, %v222
  %v247 = vadd.f32 %v54, %v224
  %v248 = vadd.f32 %v55, %v227
  %v249 = vadd.f32 %v56, %v229
  %v250 = vadd.f32 %v57, %v232
  %v251 = vadd.f32 %v58, %v234
  %252 = vst [vmem:[#allocation2] sm:$0xff] %v236
  %253 = vst [vmem:[#allocation2 + $0x8] sm:$0xff] %v237
  %254 = vst [vmem:[#allocation2 + $0x10] sm:$0xff] %v238
  %255 = vst [vmem:[#allocation2 + $0x18] sm:$0xff] %v239
  %256 = vst [vmem:[#allocation2 + $0x20] sm:$0xff] %v240
  %257 = vst [vmem:[#allocation2 + $0x28] sm:$0xff] %v241
  %258 = vst [vmem:[#allocation2 + $0x30] sm:$0xff] %v242
  %259 = vst [vmem:[#allocation2 + $0x38] sm:$0xff] %v243
  %260 = vst [vmem:[#allocation2 + $0x40] sm:$0xff] %v244
  %261 = vst [vmem:[#allocation2 + $0x48] sm:$0xff] %v245
  %262 = vst [vmem:[#allocation2 + $0x50] sm:$0xff] %v246
  %263 = vst [vmem:[#allocation2 + $0x58] sm:$0xff] %v247
  %264 = vst [vmem:[#allocation2 + $0x60] sm:$0xff] %v248
  %265 = vst [vmem:[#allocation2 + $0x68] sm:$0xff] %v249
  %266 = vst [vmem:[#allocation2 + $0x70] sm:$0xff] %v250
  %267 = vst [vmem:[#allocation2 + $0x78] sm:$0xff] %v251
  // Predicated region
  $region30: #{gnn_forward.3} parent=0 // pred_check
    %p268 = pneg %p23
  $region31: #{gnn_forward.3} parent=0 // pred_check_branch
    %270 = sbr.rel (%p268) target = $region33
  $region32: #{gnn_forward.3} parent=0 // pred_region
    %v271 = vld [vmem:[#allocation2] sm:$0xff]
    %v272 = vld [vmem:[#allocation2 + $0x8] sm:$0xff]
    %v273 = vld [vmem:[#allocation2 + $0x10] sm:$0xff]
    %v274 = vld [vmem:[#allocation2 + $0x18] sm:$0xff]
    %v275 = vld [vmem:[#allocation2 + $0x20] sm:$0xff]
    %v276 = vld [vmem:[#allocation2 + $0x28] sm:$0xff]
    %v277 = vld [vmem:[#allocation2 + $0x30] sm:$0xff]
    %v278 = vld [vmem:[#allocation2 + $0x38] sm:$0xff]
    %v279 = vld [vmem:[#allocation2 + $0x40] sm:$0xff]
    %v280 = vld [vmem:[#allocation2 + $0x48] sm:$0xff]
    %v281 = vld [vmem:[#allocation2 + $0x50] sm:$0xff]
    %v282 = vld [vmem:[#allocation2 + $0x58] sm:$0xff]
    %v283 = vld [vmem:[#allocation2 + $0x60] sm:$0xff]
    %v284 = vld [vmem:[#allocation2 + $0x68] sm:$0xff]
    %v285 = vld [vmem:[#allocation2 + $0x70] sm:$0xff]
    %v286 = vld [vmem:[#allocation2 + $0x78] sm:$0xff]
    %v287 = vpack.c.bf16 %v272, %v271
    %v288 = vpack.c.bf16 %v274, %v273
    %v289 = vpack.c.bf16 %v276, %v275
    %v290 = vpack.c.bf16 %v278, %v277
    %v291 = vpack.c.bf16 %v280, %v279
    %v292 = vpack.c.bf16 %v282, %v281
    %v293 = vpack.c.bf16 %v284, %v283
    %v294 = vpack.c.bf16 %v286, %v285
    %v295 = vld [vmem:[%s3] sm:$0xf]
    %v296 = vld [vmem:[%s3 + $0x4] sm:$0xf]
    %v297 = vld [vmem:[%s3 + $0x8] sm:$0xf]
    %v298 = vld [vmem:[%s3 + $0xc] sm:$0xf]
    %v299 = vld [vmem:[%s3 + $0x10] sm:$0xf]
    %v300 = vld [vmem:[%s3 + $0x14] sm:$0xf]
    %v301 = vld [vmem:[%s3 + $0x18] sm:$0xf]
    %v302 = vld [vmem:[%s3 + $0x1c] sm:$0xf]
    %v303 = vld [vmem:[%s3 + $0x20] sm:$0xf]
    %v304 = vld [vmem:[%s3 + $0x24] sm:$0xf]
    %v305 = vld [vmem:[%s3 + $0x28] sm:$0xf]
    %v306 = vld [vmem:[%s3 + $0x2c] sm:$0xf]
    %v307 = vld [vmem:[%s3 + $0x30] sm:$0xf]
    %v308 = vld [vmem:[%s3 + $0x34] sm:$0xf]
    %v309 = vld [vmem:[%s3 + $0x38] sm:$0xf]
    %v310 = vld [vmem:[%s3 + $0x3c] sm:$0xf]
    %v311 = vld [vmem:[%s2] sm:$0xf]
    %v312 = vld [vmem:[%s2 + $0x4] sm:$0xf]
    %v313 = vld [vmem:[%s2 + $0x8] sm:$0xf]
    %v314 = vld [vmem:[%s2 + $0xc] sm:$0xf]
    %v315 = vld [vmem:[%s2 + $0x10] sm:$0xf]
    %v316 = vld [vmem:[%s2 + $0x14] sm:$0xf]
    %v317 = vld [vmem:[%s2 + $0x18] sm:$0xf]
    %v318 = vld [vmem:[%s2 + $0x1c] sm:$0xf]
    %v319 = vld [vmem:[%s2 + $0x20] sm:$0xf]
    %v320 = vld [vmem:[%s2 + $0x24] sm:$0xf]
    %v321 = vld [vmem:[%s2 + $0x28] sm:$0xf]
    %v322 = vld [vmem:[%s2 + $0x2c] sm:$0xf]
    %v323 = vld [vmem:[%s2 + $0x30] sm:$0xf]
    %v324 = vld [vmem:[%s2 + $0x34] sm:$0xf]
    %v325 = vld [vmem:[%s2 + $0x38] sm:$0xf]
    %v326 = vld [vmem:[%s2 + $0x3c] sm:$0xf]
    %v327 = vld [vmem:[%s4] sm:$0xf]
    %v328 = vld [vmem:[%s4 + $0x4] sm:$0xf]
    %v329 = vld [vmem:[%s4 + $0x8] sm:$0xf]
    %v330 = vld [vmem:[%s4 + $0xc] sm:$0xf]
    %v331 = vld [vmem:[%s4 + $0x10] sm:$0xf]
    %v332 = vld [vmem:[%s4 + $0x14] sm:$0xf]
    %v333 = vld [vmem:[%s4 + $0x18] sm:$0xf]
    %v334 = vld [vmem:[%s4 + $0x1c] sm:$0xf]
    %v335 = vld [vmem:[%s4 + $0x20] sm:$0xf]
    %v336 = vld [vmem:[%s4 + $0x24] sm:$0xf]
    %v337 = vld [vmem:[%s4 + $0x28] sm:$0xf]
    %v338 = vld [vmem:[%s4 + $0x2c] sm:$0xf]
    %v339 = vld [vmem:[%s4 + $0x30] sm:$0xf]
    %v340 = vld [vmem:[%s4 + $0x34] sm:$0xf]
    %v341 = vld [vmem:[%s4 + $0x38] sm:$0xf]
    %v342 = vld [vmem:[%s4 + $0x3c] sm:$0xf]
    %v359 = vunpack.c.l.b16 %v311
    %v360 = vunpack.c.l.b16 %v312
    %v361 = vunpack.c.l.b16 %v313
    %v362 = vunpack.c.l.b16 %v314
    %v363 = vunpack.c.l.b16 %v315
    %v364 = vunpack.c.l.b16 %v316
    %v365 = vunpack.c.l.b16 %v317
    %v366 = vunpack.c.l.b16 %v318
    %v367 = vunpack.c.l.b16 %v319
    %v368 = vunpack.c.l.b16 %v320
    %v369 = vunpack.c.l.b16 %v321
    %v370 = vunpack.c.l.b16 %v322
    %v371 = vunpack.c.l.b16 %v323
    %v372 = vunpack.c.l.b16 %v324
    %v373 = vunpack.c.l.b16 %v325
    %v374 = vunpack.c.l.b16 %v326
    %v375 = vpack.c.b16 %v360, %v359
    %v376 = vpack.c.b16 %v362, %v361
    %v377 = vpack.c.b16 %v364, %v363
    %v378 = vpack.c.b16 %v366, %v365
    %v379 = vpack.c.b16 %v368, %v367
    %v380 = vpack.c.b16 %v370, %v369
    %v381 = vpack.c.b16 %v372, %v371
    %v382 = vpack.c.b16 %v374, %v373
    %v407 = vunpack.c.l.b16 %v327
    %v408 = vunpack.c.l.b16 %v328
    %v409 = vunpack.c.l.b16 %v329
    %v410 = vunpack.c.l.b16 %v330
    %v411 = vunpack.c.l.b16 %v331
    %v412 = vunpack.c.l.b16 %v332
    %v413 = vunpack.c.l.b16 %v333
    %v414 = vunpack.c.l.b16 %v334
    %v415 = vunpack.c.l.b16 %v335
    %v416 = vunpack.c.l.b16 %v336
    %v417 = vunpack.c.l.b16 %v337
    %v418 = vunpack.c.l.b16 %v338
    %v419 = vunpack.c.l.b16 %v339
    %v420 = vunpack.c.l.b16 %v340
    %v421 = vunpack.c.l.b16 %v341
    %v422 = vunpack.c.l.b16 %v342
    %v423 = vpack.c.b16 %v408, %v407
    %v424 = vpack.c.b16 %v410, %v409
    %v425 = vpack.c.b16 %v412, %v411
    %v426 = vpack.c.b16 %v414, %v413
    %v427 = vpack.c.b16 %v416, %v415
    %v428 = vpack.c.b16 %v418, %v417
    %v429 = vpack.c.b16 %v420, %v419
    %v430 = vpack.c.b16 %v422, %v421
    %439 = vmatpush.bf16.msra.mxu0 %v430
    %440 = vmatpush.bf16.msra.mxu0 %v429
    %441 = vmatpush.bf16.msra.mxu0 %v428
    %442 = vmatpush.bf16.msra.mxu0 %v427
    %443 = vmatpush.bf16.msra.mxu0 %v426
    %444 = vmatpush.bf16.msra.mxu0 %v425
    %445 = vmatpush.bf16.msra.mxu0 %v424
    %446 = vmatpush.bf16.msra.mxu0 %v423
    %447 = vmatmul.bf16.gmra.mxu0 %v375
    %v448 = vpop.f32.mrf.mxu0
    %v449 = vadd.f32 0.0, %v448
    %v450 = vpop.f32.mrf.mxu0
    %v451 = vadd.f32 0.0, %v450
    %452 = vmatmul.bf16.gmra.mxu0 %v376
    %v453 = vpop.f32.mrf.mxu0
    %v454 = vadd.f32 0.0, %v453
    %v455 = vpop.f32.mrf.mxu0
    %v456 = vadd.f32 0.0, %v455
    %457 = vmatmul.bf16.gmra.mxu0 %v377
    %v458 = vpop.f32.mrf.mxu0
    %v459 = vadd.f32 0.0, %v458
    %v460 = vpop.f32.mrf.mxu0
    %v461 = vadd.f32 0.0, %v460
    %462 = vmatmul.bf16.gmra.mxu0 %v378
    %v463 = vpop.f32.mrf.mxu0
    %v464 = vadd.f32 0.0, %v463
    %v465 = vpop.f32.mrf.mxu0
    %v466 = vadd.f32 0.0, %v465
    %467 = vmatmul.bf16.gmra.mxu0 %v379
    %v468 = vpop.f32.mrf.mxu0
    %v469 = vadd.f32 0.0, %v468
    %v470 = vpop.f32.mrf.mxu0
    %v471 = vadd.f32 0.0, %v470
    %472 = vmatmul.bf16.gmra.mxu0 %v380
    %v473 = vpop.f32.mrf.mxu0
    %v474 = vadd.f32 0.0, %v473
    %v475 = vpop.f32.mrf.mxu0
    %v476 = vadd.f32 0.0, %v475
    %477 = vmatmul.bf16.gmra.mxu0 %v381
    %v478 = vpop.f32.mrf.mxu0
    %v479 = vadd.f32 0.0, %v478
    %v480 = vpop.f32.mrf.mxu0
    %v481 = vadd.f32 0.0, %v480
    %482 = vmatmul.bf16.gmra.mxu0 %v382
    %v483 = vpop.f32.mrf.mxu0
    %v484 = vadd.f32 0.0, %v483
    %v485 = vpop.f32.mrf.mxu0
    %v486 = vadd.f32 0.0, %v485
    %487 = vdwg.mxu0
    %v504 = vunpack.c.l.b16 %v295
    %v505 = vunpack.c.l.b16 %v296
    %v506 = vunpack.c.l.b16 %v297
    %v507 = vunpack.c.l.b16 %v298
    %v508 = vunpack.c.l.b16 %v299
    %v509 = vunpack.c.l.b16 %v300
    %v510 = vunpack.c.l.b16 %v301
    %v511 = vunpack.c.l.b16 %v302
    %v512 = vunpack.c.l.b16 %v303
    %v513 = vunpack.c.l.b16 %v304
    %v514 = vunpack.c.l.b16 %v305
    %v515 = vunpack.c.l.b16 %v306
    %v516 = vunpack.c.l.b16 %v307
    %v517 = vunpack.c.l.b16 %v308
    %v518 = vunpack.c.l.b16 %v309
    %v519 = vunpack.c.l.b16 %v310
    %v520 = vpack.c.b16 %v505, %v504
    %v521 = vpack.c.b16 %v507, %v506
    %v522 = vpack.c.b16 %v509, %v508
    %v523 = vpack.c.b16 %v511, %v510
    %v524 = vpack.c.b16 %v513, %v512
    %v525 = vpack.c.b16 %v515, %v514
    %v526 = vpack.c.b16 %v517, %v516
    %v527 = vpack.c.b16 %v519, %v518
    %536 = vmatpush.bf16.msra.mxu0 %v527
    %537 = vmatpush.bf16.msra.mxu0 %v526
    %538 = vmatpush.bf16.msra.mxu0 %v525
    %539 = vmatpush.bf16.msra.mxu0 %v524
    %540 = vmatpush.bf16.msra.mxu0 %v523
    %541 = vmatpush.bf16.msra.mxu0 %v522
    %542 = vmatpush.bf16.msra.mxu0 %v521
    %543 = vmatpush.bf16.msra.mxu0 %v520
    %544 = vmatmul.bf16.gmra.mxu0 %v287
    %v545 = vpop.f32.mrf.mxu0
    %v546 = vadd.f32 %v449, %v545
    %v547 = vpop.f32.mrf.mxu0
    %v548 = vadd.f32 %v451, %v547
    %549 = vmatmul.bf16.gmra.mxu0 %v288
    %v550 = vpop.f32.mrf.mxu0
    %v551 = vadd.f32 %v454, %v550
    %v552 = vpop.f32.mrf.mxu0
    %v553 = vadd.f32 %v456, %v552
    %554 = vmatmul.bf16.gmra.mxu0 %v289
    %v555 = vpop.f32.mrf.mxu0
    %v556 = vadd.f32 %v459, %v555
    %v557 = vpop.f32.mrf.mxu0
    %v558 = vadd.f32 %v461, %v557
    %559 = vmatmul.bf16.gmra.mxu0 %v290
    %v560 = vpop.f32.mrf.mxu0
    %v561 = vadd.f32 %v464, %v560
    %v562 = vpop.f32.mrf.mxu0
    %v563 = vadd.f32 %v466, %v562
    %564 = vmatmul.bf16.gmra.mxu0 %v291
    %v565 = vpop.f32.mrf.mxu0
    %v566 = vadd.f32 %v469, %v565
    %v567 = vpop.f32.mrf.mxu0
    %v568 = vadd.f32 %v471, %v567
    %569 = vmatmul.bf16.gmra.mxu0 %v292
    %v570 = vpop.f32.mrf.mxu0
    %v571 = vadd.f32 %v474, %v570
    %v572 = vpop.f32.mrf.mxu0
    %v573 = vadd.f32 %v476, %v572
    %574 = vmatmul.bf16.gmra.mxu0 %v293
    %v575 = vpop.f32.mrf.mxu0
    %v576 = vadd.f32 %v479, %v575
    %v577 = vpop.f32.mrf.mxu0
    %v578 = vadd.f32 %v481, %v577
    %579 = vmatmul.bf16.gmra.mxu0 %v294
    %v580 = vpop.f32.mrf.mxu0
    %v581 = vadd.f32 %v484, %v580
    %v582 = vpop.f32.mrf.mxu0
    %v583 = vadd.f32 %v486, %v582
    %584 = vdwg.mxu0
    %v585 = vld [vmem:[%s5] sm:$0x1]
    %v587 = vperm.slane %v585, 0
    %v589 = vadd.f32 %v546, %v587
    %v590 = vadd.f32 %v548, %v587
    %v591 = vadd.f32 %v551, %v587
    %v592 = vadd.f32 %v553, %v587
    %v593 = vadd.f32 %v556, %v587
    %v594 = vadd.f32 %v558, %v587
    %v595 = vadd.f32 %v561, %v587
    %v596 = vadd.f32 %v563, %v587
    %v597 = vadd.f32 %v566, %v587
    %v598 = vadd.f32 %v568, %v587
    %v599 = vadd.f32 %v571, %v587
    %v600 = vadd.f32 %v573, %v587
    %v601 = vadd.f32 %v576, %v587
    %v602 = vadd.f32 %v578, %v587
    %v603 = vadd.f32 %v581, %v587
    %v604 = vadd.f32 %v583, %v587
    %605 = vst [vmem:[%s6] sm:$0xff] %v589
    %606 = vst [vmem:[%s6 + $0x8] sm:$0xff] %v590
    %607 = vst [vmem:[%s6 + $0x10] sm:$0xff] %v591
    %608 = vst [vmem:[%s6 + $0x18] sm:$0xff] %v592
    %609 = vst [vmem:[%s6 + $0x20] sm:$0xff] %v593
    %610 = vst [vmem:[%s6 + $0x28] sm:$0xff] %v594
    %611 = vst [vmem:[%s6 + $0x30] sm:$0xff] %v595
    %612 = vst [vmem:[%s6 + $0x38] sm:$0xff] %v596
    %613 = vst [vmem:[%s6 + $0x40] sm:$0xff] %v597
    %614 = vst [vmem:[%s6 + $0x48] sm:$0xff] %v598
    %615 = vst [vmem:[%s6 + $0x50] sm:$0xff] %v599
    %616 = vst [vmem:[%s6 + $0x58] sm:$0xff] %v600
    %617 = vst [vmem:[%s6 + $0x60] sm:$0xff] %v601
    %618 = vst [vmem:[%s6 + $0x68] sm:$0xff] %v602
    %619 = vst [vmem:[%s6 + $0x70] sm:$0xff] %v603
    %620 = vst [vmem:[%s6 + $0x78] sm:$0xff] %v604
  $region33: #{gnn_forward.3} parent=0 // pred_fallthru
    _
  // Predicated region
  $region34: #{gnn_forward.3} parent=0 // pred_check
    _
  $region35: #{gnn_forward.3} parent=0 // pred_check_branch
    %622 = sbr.rel (0) target = $region37
  $region36: #{gnn_forward.3} parent=0 // pred_region
    _
  $region37: #{gnn_forward.3} parent=0 // pred_fallthru
    _
  // Predicated region
  $region38: #{gnn_forward.3} parent=0 // pred_check
    _
  $region39: #{gnn_forward.3} parent=0 // pred_check_branch
    %624 = sbr.rel (0) target = $region41
  $region40: #{gnn_forward.3} parent=0 // pred_region
    _
  $region41: #{gnn_forward.3} parent=0 // pred_fallthru
    _

// kernel: gnn_forward.2
$region0: #{gnn_forward.2}
  #allocation0 [shape = 'u32[]', space=smem, size = 0x4, offset = 0x4, fixed_abs, tag = 'smem constant byte address 0x4 - core index']
  #allocation1 [shape = 'u32[72,128]{1,0:T(1,128)}', space=vmem, size = 0x9000, scoped, tag = 'internal scratch']
  #allocation2 [shape = 'f32[128,128]{1,0:T(8,128)}', space=vmem, size = 0x10000, scoped, tag = 'scratch operand']
  %s0 = inlined_call_operand.vmem [shape: bf16[128,128], index: 0, kind: input, shape index: {}]
  %s1 = inlined_call_operand.vmem [shape: bf16[128,128], index: 1, kind: input, shape index: {}, may-alias: {1,2}]
  %s2 = inlined_call_operand.vmem [shape: bf16[128,128], index: 2, kind: input, shape index: {}, may-alias: {1,2}]
  %s3 = inlined_call_operand.vmem [shape: bf16[128,128], index: 3, kind: input, shape index: {}]
  %s4 = inlined_call_operand.vmem [shape: bf16[128,128], index: 4, kind: input, shape index: {}]
  %s5 = inlined_call_operand.vmem [shape: f32[1,128], index: 5, kind: input, shape index: {}]
  %s6 = inlined_call_operand.vmem [shape: bf16[128,128], index: 6, kind: output, shape index: {}]
  %s7 = sld [smem:[#allocation0]]
  $region42: #{gnn_forward.2} parent=0
    _
  %s9 = ssub.s32 1, %s7
  %s10 = scalar_select 0, %s9, %s7
  // Predicated region
  $region2: #{gnn_forward.2} parent=0 // pred_check
    _
  $region3: #{gnn_forward.2} parent=0 // pred_check_branch
    %12 = sbr.rel (0) target = $region5
  $region4: #{gnn_forward.2} parent=0 // pred_region
    _
  $region5: #{gnn_forward.2} parent=0 // pred_fallthru
    _
  // Predicated region
  $region6: #{gnn_forward.2} parent=0 // pred_check
    _
  $region7: #{gnn_forward.2} parent=0 // pred_check_branch
    %14 = sbr.rel (0) target = $region9
  $region8: #{gnn_forward.2} parent=0 // pred_region
    _
  $region9: #{gnn_forward.2} parent=0 // pred_fallthru
    _
  // Predicated region
  $region10: #{gnn_forward.2} parent=0 // pred_check
    _
  $region11: #{gnn_forward.2} parent=0 // pred_check_branch
    %16 = sbr.rel (0) target = $region13
  $region12: #{gnn_forward.2} parent=0 // pred_region
    _
  $region13: #{gnn_forward.2} parent=0 // pred_fallthru
    _
  // Predicated region
  $region14: #{gnn_forward.2} parent=0 // pred_check
    _
  $region15: #{gnn_forward.2} parent=0 // pred_check_branch
    %18 = sbr.rel (0) target = $region17
  $region16: #{gnn_forward.2} parent=0 // pred_region
    _
  $region17: #{gnn_forward.2} parent=0 // pred_fallthru
    _
  // Predicated region
  $region18: #{gnn_forward.2} parent=0 // pred_check
    _
  $region19: #{gnn_forward.2} parent=0 // pred_check_branch
    %20 = sbr.rel (0) target = $region21
  $region20: #{gnn_forward.2} parent=0 // pred_region
    _
  $region21: #{gnn_forward.2} parent=0 // pred_fallthru
    _
  // Predicated region
  $region22: #{gnn_forward.2} parent=0 // pred_check
    _
  $region23: #{gnn_forward.2} parent=0 // pred_check_branch
    %22 = sbr.rel (0) target = $region25
  $region24: #{gnn_forward.2} parent=0 // pred_region
    _
  $region25: #{gnn_forward.2} parent=0 // pred_fallthru
    _
  %p23 = scmp.eq.s32.totalorder 0, 0
  // Predicated region
  $region26: #{gnn_forward.2} parent=0 // pred_check
    %p24 = pneg %p23
  $region27: #{gnn_forward.2} parent=0 // pred_check_branch
    %26 = sbr.rel (%p24) target = $region29
  $region28: #{gnn_forward.2} parent=0 // pred_region
    %27 = vst [vmem:[#allocation2] sm:$0xff] 0.0
    %28 = vst [vmem:[#allocation2 + $0x8] sm:$0xff] 0.0
    %29 = vst [vmem:[#allocation2 + $0x10] sm:$0xff] 0.0
    %30 = vst [vmem:[#allocation2 + $0x18] sm:$0xff] 0.0
    %31 = vst [vmem:[#allocation2 + $0x20] sm:$0xff] 0.0
    %32 = vst [vmem:[#allocation2 + $0x28] sm:$0xff] 0.0
    %33 = vst [vmem:[#allocation2 + $0x30] sm:$0xff] 0.0
    %34 = vst [vmem:[#allocation2 + $0x38] sm:$0xff] 0.0
    %35 = vst [vmem:[#allocation2 + $0x40] sm:$0xff] 0.0
    %36 = vst [vmem:[#allocation2 + $0x48] sm:$0xff] 0.0
    %37 = vst [vmem:[#allocation2 + $0x50] sm:$0xff] 0.0
    %38 = vst [vmem:[#allocation2 + $0x58] sm:$0xff] 0.0
    %39 = vst [vmem:[#allocation2 + $0x60] sm:$0xff] 0.0
    %40 = vst [vmem:[#allocation2 + $0x68] sm:$0xff] 0.0
    %41 = vst [vmem:[#allocation2 + $0x70] sm:$0xff] 0.0
    %42 = vst [vmem:[#allocation2 + $0x78] sm:$0xff] 0.0
  $region29: #{gnn_forward.2} parent=0 // pred_fallthru
    _
  %v43 = vld [vmem:[#allocation2] sm:$0xff]
  %v44 = vld [vmem:[#allocation2 + $0x8] sm:$0xff]
  %v45 = vld [vmem:[#allocation2 + $0x10] sm:$0xff]
  %v46 = vld [vmem:[#allocation2 + $0x18] sm:$0xff]
  %v47 = vld [vmem:[#allocation2 + $0x20] sm:$0xff]
  %v48 = vld [vmem:[#allocation2 + $0x28] sm:$0xff]
  %v49 = vld [vmem:[#allocation2 + $0x30] sm:$0xff]
  %v50 = vld [vmem:[#allocation2 + $0x38] sm:$0xff]
  %v51 = vld [vmem:[#allocation2 + $0x40] sm:$0xff]
  %v52 = vld [vmem:[#allocation2 + $0x48] sm:$0xff]
  %v53 = vld [vmem:[#allocation2 + $0x50] sm:$0xff]
  %v54 = vld [vmem:[#allocation2 + $0x58] sm:$0xff]
  %v55 = vld [vmem:[#allocation2 + $0x60] sm:$0xff]
  %v56 = vld [vmem:[#allocation2 + $0x68] sm:$0xff]
  %v57 = vld [vmem:[#allocation2 + $0x70] sm:$0xff]
  %v58 = vld [vmem:[#allocation2 + $0x78] sm:$0xff]
  %v59 = vld [vmem:[%s0] sm:$0xf]
  %v60 = vld [vmem:[%s0 + $0x4] sm:$0xf]
  %v61 = vld [vmem:[%s0 + $0x8] sm:$0xf]
  %v62 = vld [vmem:[%s0 + $0xc] sm:$0xf]
  %v63 = vld [vmem:[%s0 + $0x10] sm:$0xf]
  %v64 = vld [vmem:[%s0 + $0x14] sm:$0xf]
  %v65 = vld [vmem:[%s0 + $0x18] sm:$0xf]
  %v66 = vld [vmem:[%s0 + $0x1c] sm:$0xf]
  %v67 = vld [vmem:[%s0 + $0x20] sm:$0xf]
  %v68 = vld [vmem:[%s0 + $0x24] sm:$0xf]
  %v69 = vld [vmem:[%s0 + $0x28] sm:$0xf]
  %v70 = vld [vmem:[%s0 + $0x2c] sm:$0xf]
  %v71 = vld [vmem:[%s0 + $0x30] sm:$0xf]
  %v72 = vld [vmem:[%s0 + $0x34] sm:$0xf]
  %v73 = vld [vmem:[%s0 + $0x38] sm:$0xf]
  %v74 = vld [vmem:[%s0 + $0x3c] sm:$0xf]
  %v75 = vld [vmem:[%s1] sm:$0xf]
  %v76 = vld [vmem:[%s1 + $0x4] sm:$0xf]
  %v77 = vld [vmem:[%s1 + $0x8] sm:$0xf]
  %v78 = vld [vmem:[%s1 + $0xc] sm:$0xf]
  %v79 = vld [vmem:[%s1 + $0x10] sm:$0xf]
  %v80 = vld [vmem:[%s1 + $0x14] sm:$0xf]
  %v81 = vld [vmem:[%s1 + $0x18] sm:$0xf]
  %v82 = vld [vmem:[%s1 + $0x1c] sm:$0xf]
  %v83 = vld [vmem:[%s1 + $0x20] sm:$0xf]
  %v84 = vld [vmem:[%s1 + $0x24] sm:$0xf]
  %v85 = vld [vmem:[%s1 + $0x28] sm:$0xf]
  %v86 = vld [vmem:[%s1 + $0x2c] sm:$0xf]
  %v87 = vld [vmem:[%s1 + $0x30] sm:$0xf]
  %v88 = vld [vmem:[%s1 + $0x34] sm:$0xf]
  %v89 = vld [vmem:[%s1 + $0x38] sm:$0xf]
  %v90 = vld [vmem:[%s1 + $0x3c] sm:$0xf]
  %v107 = vunpack.c.l.b16 %v59
  %v108 = vunpack.c.l.b16 %v60
  %v109 = vunpack.c.l.b16 %v61
  %v110 = vunpack.c.l.b16 %v62
  %v111 = vunpack.c.l.b16 %v63
  %v112 = vunpack.c.l.b16 %v64
  %v113 = vunpack.c.l.b16 %v65
  %v114 = vunpack.c.l.b16 %v66
  %v115 = vunpack.c.l.b16 %v67
  %v116 = vunpack.c.l.b16 %v68
  %v117 = vunpack.c.l.b16 %v69
  %v118 = vunpack.c.l.b16 %v70
  %v119 = vunpack.c.l.b16 %v71
  %v120 = vunpack.c.l.b16 %v72
  %v121 = vunpack.c.l.b16 %v73
  %v122 = vunpack.c.l.b16 %v74
  %v123 = vpack.c.b16 %v108, %v107
  %v124 = vpack.c.b16 %v110, %v109
  %v125 = vpack.c.b16 %v112, %v111
  %v126 = vpack.c.b16 %v114, %v113
  %v127 = vpack.c.b16 %v116, %v115
  %v128 = vpack.c.b16 %v118, %v117
  %v129 = vpack.c.b16 %v120, %v119
  %v130 = vpack.c.b16 %v122, %v121
  %v155 = vunpack.c.l.b16 %v75
  %v156 = vunpack.c.l.b16 %v76
  %v157 = vunpack.c.l.b16 %v77
  %v158 = vunpack.c.l.b16 %v78
  %v159 = vunpack.c.l.b16 %v79
  %v160 = vunpack.c.l.b16 %v80
  %v161 = vunpack.c.l.b16 %v81
  %v162 = vunpack.c.l.b16 %v82
  %v163 = vunpack.c.l.b16 %v83
  %v164 = vunpack.c.l.b16 %v84
  %v165 = vunpack.c.l.b16 %v85
  %v166 = vunpack.c.l.b16 %v86
  %v167 = vunpack.c.l.b16 %v87
  %v168 = vunpack.c.l.b16 %v88
  %v169 = vunpack.c.l.b16 %v89
  %v170 = vunpack.c.l.b16 %v90
  %v171 = vpack.c.b16 %v156, %v155
  %v172 = vpack.c.b16 %v158, %v157
  %v173 = vpack.c.b16 %v160, %v159
  %v174 = vpack.c.b16 %v162, %v161
  %v175 = vpack.c.b16 %v164, %v163
  %v176 = vpack.c.b16 %v166, %v165
  %v177 = vpack.c.b16 %v168, %v167
  %v178 = vpack.c.b16 %v170, %v169
  %187 = vmatpush.bf16.msra.mxu0 %v178
  %188 = vmatpush.bf16.msra.mxu0 %v177
  %189 = vmatpush.bf16.msra.mxu0 %v176
  %190 = vmatpush.bf16.msra.mxu0 %v175
  %191 = vmatpush.bf16.msra.mxu0 %v174
  %192 = vmatpush.bf16.msra.mxu0 %v173
  %193 = vmatpush.bf16.msra.mxu0 %v172
  %194 = vmatpush.bf16.msra.mxu0 %v171
  %195 = vmatmul.bf16.gmra.mxu0 %v123
  %v196 = vpop.f32.mrf.mxu0
  %v197 = vadd.f32 0.0, %v196
  %v198 = vpop.f32.mrf.mxu0
  %v199 = vadd.f32 0.0, %v198
  %200 = vmatmul.bf16.gmra.mxu0 %v124
  %v201 = vpop.f32.mrf.mxu0
  %v202 = vadd.f32 0.0, %v201
  %v203 = vpop.f32.mrf.mxu0
  %v204 = vadd.f32 0.0, %v203
  %205 = vmatmul.bf16.gmra.mxu0 %v125
  %v206 = vpop.f32.mrf.mxu0
  %v207 = vadd.f32 0.0, %v206
  %v208 = vpop.f32.mrf.mxu0
  %v209 = vadd.f32 0.0, %v208
  %210 = vmatmul.bf16.gmra.mxu0 %v126
  %v211 = vpop.f32.mrf.mxu0
  %v212 = vadd.f32 0.0, %v211
  %v213 = vpop.f32.mrf.mxu0
  %v214 = vadd.f32 0.0, %v213
  %215 = vmatmul.bf16.gmra.mxu0 %v127
  %v216 = vpop.f32.mrf.mxu0
  %v217 = vadd.f32 0.0, %v216
  %v218 = vpop.f32.mrf.mxu0
  %v219 = vadd.f32 0.0, %v218
  %220 = vmatmul.bf16.gmra.mxu0 %v128
  %v221 = vpop.f32.mrf.mxu0
  %v222 = vadd.f32 0.0, %v221
  %v223 = vpop.f32.mrf.mxu0
  %v224 = vadd.f32 0.0, %v223
  %225 = vmatmul.bf16.gmra.mxu0 %v129
  %v226 = vpop.f32.mrf.mxu0
  %v227 = vadd.f32 0.0, %v226
  %v228 = vpop.f32.mrf.mxu0
  %v229 = vadd.f32 0.0, %v228
  %230 = vmatmul.bf16.gmra.mxu0 %v130
  %v231 = vpop.f32.mrf.mxu0
  %v232 = vadd.f32 0.0, %v231
  %v233 = vpop.f32.mrf.mxu0
  %v234 = vadd.f32 0.0, %v233
  %235 = vdwg.mxu0
  %v236 = vadd.f32 %v43, %v197
  %v237 = vadd.f32 %v44, %v199
  %v238 = vadd.f32 %v45, %v202
  %v239 = vadd.f32 %v46, %v204
  %v240 = vadd.f32 %v47, %v207
  %v241 = vadd.f32 %v48, %v209
  %v242 = vadd.f32 %v49, %v212
  %v243 = vadd.f32 %v50, %v214
  %v244 = vadd.f32 %v51, %v217
  %v245 = vadd.f32 %v52, %v219
  %v246 = vadd.f32 %v53, %v222
  %v247 = vadd.f32 %v54, %v224
  %v248 = vadd.f32 %v55, %v227
  %v249 = vadd.f32 %v56, %v229
  %v250 = vadd.f32 %v57, %v232
  %v251 = vadd.f32 %v58, %v234
  %252 = vst [vmem:[#allocation2] sm:$0xff] %v236
  %253 = vst [vmem:[#allocation2 + $0x8] sm:$0xff] %v237
  %254 = vst [vmem:[#allocation2 + $0x10] sm:$0xff] %v238
  %255 = vst [vmem:[#allocation2 + $0x18] sm:$0xff] %v239
  %256 = vst [vmem:[#allocation2 + $0x20] sm:$0xff] %v240
  %257 = vst [vmem:[#allocation2 + $0x28] sm:$0xff] %v241
  %258 = vst [vmem:[#allocation2 + $0x30] sm:$0xff] %v242
  %259 = vst [vmem:[#allocation2 + $0x38] sm:$0xff] %v243
  %260 = vst [vmem:[#allocation2 + $0x40] sm:$0xff] %v244
  %261 = vst [vmem:[#allocation2 + $0x48] sm:$0xff] %v245
  %262 = vst [vmem:[#allocation2 + $0x50] sm:$0xff] %v246
  %263 = vst [vmem:[#allocation2 + $0x58] sm:$0xff] %v247
  %264 = vst [vmem:[#allocation2 + $0x60] sm:$0xff] %v248
  %265 = vst [vmem:[#allocation2 + $0x68] sm:$0xff] %v249
  %266 = vst [vmem:[#allocation2 + $0x70] sm:$0xff] %v250
  %267 = vst [vmem:[#allocation2 + $0x78] sm:$0xff] %v251
  // Predicated region
  $region30: #{gnn_forward.2} parent=0 // pred_check
    %p268 = pneg %p23
  $region31: #{gnn_forward.2} parent=0 // pred_check_branch
    %270 = sbr.rel (%p268) target = $region33
  $region32: #{gnn_forward.2} parent=0 // pred_region
    %v271 = vld [vmem:[#allocation2] sm:$0xff]
    %v272 = vld [vmem:[#allocation2 + $0x8] sm:$0xff]
    %v273 = vld [vmem:[#allocation2 + $0x10] sm:$0xff]
    %v274 = vld [vmem:[#allocation2 + $0x18] sm:$0xff]
    %v275 = vld [vmem:[#allocation2 + $0x20] sm:$0xff]
    %v276 = vld [vmem:[#allocation2 + $0x28] sm:$0xff]
    %v277 = vld [vmem:[#allocation2 + $0x30] sm:$0xff]
    %v278 = vld [vmem:[#allocation2 + $0x38] sm:$0xff]
    %v279 = vld [vmem:[#allocation2 + $0x40] sm:$0xff]
    %v280 = vld [vmem:[#allocation2 + $0x48] sm:$0xff]
    %v281 = vld [vmem:[#allocation2 + $0x50] sm:$0xff]
    %v282 = vld [vmem:[#allocation2 + $0x58] sm:$0xff]
    %v283 = vld [vmem:[#allocation2 + $0x60] sm:$0xff]
    %v284 = vld [vmem:[#allocation2 + $0x68] sm:$0xff]
    %v285 = vld [vmem:[#allocation2 + $0x70] sm:$0xff]
    %v286 = vld [vmem:[#allocation2 + $0x78] sm:$0xff]
    %v287 = vpack.c.bf16 %v272, %v271
    %v288 = vpack.c.bf16 %v274, %v273
    %v289 = vpack.c.bf16 %v276, %v275
    %v290 = vpack.c.bf16 %v278, %v277
    %v291 = vpack.c.bf16 %v280, %v279
    %v292 = vpack.c.bf16 %v282, %v281
    %v293 = vpack.c.bf16 %v284, %v283
    %v294 = vpack.c.bf16 %v286, %v285
    %v295 = vld [vmem:[%s3] sm:$0xf]
    %v296 = vld [vmem:[%s3 + $0x4] sm:$0xf]
    %v297 = vld [vmem:[%s3 + $0x8] sm:$0xf]
    %v298 = vld [vmem:[%s3 + $0xc] sm:$0xf]
    %v299 = vld [vmem:[%s3 + $0x10] sm:$0xf]
    %v300 = vld [vmem:[%s3 + $0x14] sm:$0xf]
    %v301 = vld [vmem:[%s3 + $0x18] sm:$0xf]
    %v302 = vld [vmem:[%s3 + $0x1c] sm:$0xf]
    %v303 = vld [vmem:[%s3 + $0x20] sm:$0xf]
    %v304 = vld [vmem:[%s3 + $0x24] sm:$0xf]
    %v305 = vld [vmem:[%s3 + $0x28] sm:$0xf]
    %v306 = vld [vmem:[%s3 + $0x2c] sm:$0xf]
    %v307 = vld [vmem:[%s3 + $0x30] sm:$0xf]
    %v308 = vld [vmem:[%s3 + $0x34] sm:$0xf]
    %v309 = vld [vmem:[%s3 + $0x38] sm:$0xf]
    %v310 = vld [vmem:[%s3 + $0x3c] sm:$0xf]
    %v311 = vld [vmem:[%s2] sm:$0xf]
    %v312 = vld [vmem:[%s2 + $0x4] sm:$0xf]
    %v313 = vld [vmem:[%s2 + $0x8] sm:$0xf]
    %v314 = vld [vmem:[%s2 + $0xc] sm:$0xf]
    %v315 = vld [vmem:[%s2 + $0x10] sm:$0xf]
    %v316 = vld [vmem:[%s2 + $0x14] sm:$0xf]
    %v317 = vld [vmem:[%s2 + $0x18] sm:$0xf]
    %v318 = vld [vmem:[%s2 + $0x1c] sm:$0xf]
    %v319 = vld [vmem:[%s2 + $0x20] sm:$0xf]
    %v320 = vld [vmem:[%s2 + $0x24] sm:$0xf]
    %v321 = vld [vmem:[%s2 + $0x28] sm:$0xf]
    %v322 = vld [vmem:[%s2 + $0x2c] sm:$0xf]
    %v323 = vld [vmem:[%s2 + $0x30] sm:$0xf]
    %v324 = vld [vmem:[%s2 + $0x34] sm:$0xf]
    %v325 = vld [vmem:[%s2 + $0x38] sm:$0xf]
    %v326 = vld [vmem:[%s2 + $0x3c] sm:$0xf]
    %v327 = vld [vmem:[%s4] sm:$0xf]
    %v328 = vld [vmem:[%s4 + $0x4] sm:$0xf]
    %v329 = vld [vmem:[%s4 + $0x8] sm:$0xf]
    %v330 = vld [vmem:[%s4 + $0xc] sm:$0xf]
    %v331 = vld [vmem:[%s4 + $0x10] sm:$0xf]
    %v332 = vld [vmem:[%s4 + $0x14] sm:$0xf]
    %v333 = vld [vmem:[%s4 + $0x18] sm:$0xf]
    %v334 = vld [vmem:[%s4 + $0x1c] sm:$0xf]
    %v335 = vld [vmem:[%s4 + $0x20] sm:$0xf]
    %v336 = vld [vmem:[%s4 + $0x24] sm:$0xf]
    %v337 = vld [vmem:[%s4 + $0x28] sm:$0xf]
    %v338 = vld [vmem:[%s4 + $0x2c] sm:$0xf]
    %v339 = vld [vmem:[%s4 + $0x30] sm:$0xf]
    %v340 = vld [vmem:[%s4 + $0x34] sm:$0xf]
    %v341 = vld [vmem:[%s4 + $0x38] sm:$0xf]
    %v342 = vld [vmem:[%s4 + $0x3c] sm:$0xf]
    %v359 = vunpack.c.l.b16 %v311
    %v360 = vunpack.c.l.b16 %v312
    %v361 = vunpack.c.l.b16 %v313
    %v362 = vunpack.c.l.b16 %v314
    %v363 = vunpack.c.l.b16 %v315
    %v364 = vunpack.c.l.b16 %v316
    %v365 = vunpack.c.l.b16 %v317
    %v366 = vunpack.c.l.b16 %v318
    %v367 = vunpack.c.l.b16 %v319
    %v368 = vunpack.c.l.b16 %v320
    %v369 = vunpack.c.l.b16 %v321
    %v370 = vunpack.c.l.b16 %v322
    %v371 = vunpack.c.l.b16 %v323
    %v372 = vunpack.c.l.b16 %v324
    %v373 = vunpack.c.l.b16 %v325
    %v374 = vunpack.c.l.b16 %v326
    %v375 = vpack.c.b16 %v360, %v359
    %v376 = vpack.c.b16 %v362, %v361
    %v377 = vpack.c.b16 %v364, %v363
    %v378 = vpack.c.b16 %v366, %v365
    %v379 = vpack.c.b16 %v368, %v367
    %v380 = vpack.c.b16 %v370, %v369
    %v381 = vpack.c.b16 %v372, %v371
    %v382 = vpack.c.b16 %v374, %v373
    %v407 = vunpack.c.l.b16 %v327
    %v408 = vunpack.c.l.b16 %v328
    %v409 = vunpack.c.l.b16 %v329
    %v410 = vunpack.c.l.b16 %v330
    %v411 = vunpack.c.l.b16 %v331
    %v412 = vunpack.c.l.b16 %v332
    %v413 = vunpack.c.l.b16 %v333
    %v414 = vunpack.c.l.b16 %v334
    %v415 = vunpack.c.l.b16 %v335
    %v416 = vunpack.c.l.b16 %v336
    %v417 = vunpack.c.l.b16 %v337
    %v418 = vunpack.c.l.b16 %v338
    %v419 = vunpack.c.l.b16 %v339
    %v420 = vunpack.c.l.b16 %v340
    %v421 = vunpack.c.l.b16 %v341
    %v422 = vunpack.c.l.b16 %v342
    %v423 = vpack.c.b16 %v408, %v407
    %v424 = vpack.c.b16 %v410, %v409
    %v425 = vpack.c.b16 %v412, %v411
    %v426 = vpack.c.b16 %v414, %v413
    %v427 = vpack.c.b16 %v416, %v415
    %v428 = vpack.c.b16 %v418, %v417
    %v429 = vpack.c.b16 %v420, %v419
    %v430 = vpack.c.b16 %v422, %v421
    %439 = vmatpush.bf16.msra.mxu0 %v430
    %440 = vmatpush.bf16.msra.mxu0 %v429
    %441 = vmatpush.bf16.msra.mxu0 %v428
    %442 = vmatpush.bf16.msra.mxu0 %v427
    %443 = vmatpush.bf16.msra.mxu0 %v426
    %444 = vmatpush.bf16.msra.mxu0 %v425
    %445 = vmatpush.bf16.msra.mxu0 %v424
    %446 = vmatpush.bf16.msra.mxu0 %v423
    %447 = vmatmul.bf16.gmra.mxu0 %v375
    %v448 = vpop.f32.mrf.mxu0
    %v449 = vadd.f32 0.0, %v448
    %v450 = vpop.f32.mrf.mxu0
    %v451 = vadd.f32 0.0, %v450
    %452 = vmatmul.bf16.gmra.mxu0 %v376
    %v453 = vpop.f32.mrf.mxu0
    %v454 = vadd.f32 0.0, %v453
    %v455 = vpop.f32.mrf.mxu0
    %v456 = vadd.f32 0.0, %v455
    %457 = vmatmul.bf16.gmra.mxu0 %v377
    %v458 = vpop.f32.mrf.mxu0
    %v459 = vadd.f32 0.0, %v458
    %v460 = vpop.f32.mrf.mxu0
    %v461 = vadd.f32 0.0, %v460
    %462 = vmatmul.bf16.gmra.mxu0 %v378
    %v463 = vpop.f32.mrf.mxu0
    %v464 = vadd.f32 0.0, %v463
    %v465 = vpop.f32.mrf.mxu0
    %v466 = vadd.f32 0.0, %v465
    %467 = vmatmul.bf16.gmra.mxu0 %v379
    %v468 = vpop.f32.mrf.mxu0
    %v469 = vadd.f32 0.0, %v468
    %v470 = vpop.f32.mrf.mxu0
    %v471 = vadd.f32 0.0, %v470
    %472 = vmatmul.bf16.gmra.mxu0 %v380
    %v473 = vpop.f32.mrf.mxu0
    %v474 = vadd.f32 0.0, %v473
    %v475 = vpop.f32.mrf.mxu0
    %v476 = vadd.f32 0.0, %v475
    %477 = vmatmul.bf16.gmra.mxu0 %v381
    %v478 = vpop.f32.mrf.mxu0
    %v479 = vadd.f32 0.0, %v478
    %v480 = vpop.f32.mrf.mxu0
    %v481 = vadd.f32 0.0, %v480
    %482 = vmatmul.bf16.gmra.mxu0 %v382
    %v483 = vpop.f32.mrf.mxu0
    %v484 = vadd.f32 0.0, %v483
    %v485 = vpop.f32.mrf.mxu0
    %v486 = vadd.f32 0.0, %v485
    %487 = vdwg.mxu0
    %v504 = vunpack.c.l.b16 %v295
    %v505 = vunpack.c.l.b16 %v296
    %v506 = vunpack.c.l.b16 %v297
    %v507 = vunpack.c.l.b16 %v298
    %v508 = vunpack.c.l.b16 %v299
    %v509 = vunpack.c.l.b16 %v300
    %v510 = vunpack.c.l.b16 %v301
    %v511 = vunpack.c.l.b16 %v302
    %v512 = vunpack.c.l.b16 %v303
    %v513 = vunpack.c.l.b16 %v304
    %v514 = vunpack.c.l.b16 %v305
    %v515 = vunpack.c.l.b16 %v306
    %v516 = vunpack.c.l.b16 %v307
    %v517 = vunpack.c.l.b16 %v308
    %v518 = vunpack.c.l.b16 %v309
    %v519 = vunpack.c.l.b16 %v310
    %v520 = vpack.c.b16 %v505, %v504
    %v521 = vpack.c.b16 %v507, %v506
    %v522 = vpack.c.b16 %v509, %v508
    %v523 = vpack.c.b16 %v511, %v510
    %v524 = vpack.c.b16 %v513, %v512
    %v525 = vpack.c.b16 %v515, %v514
    %v526 = vpack.c.b16 %v517, %v516
    %v527 = vpack.c.b16 %v519, %v518
    %536 = vmatpush.bf16.msra.mxu0 %v527
    %537 = vmatpush.bf16.msra.mxu0 %v526
    %538 = vmatpush.bf16.msra.mxu0 %v525
    %539 = vmatpush.bf16.msra.mxu0 %v524
    %540 = vmatpush.bf16.msra.mxu0 %v523
    %541 = vmatpush.bf16.msra.mxu0 %v522
    %542 = vmatpush.bf16.msra.mxu0 %v521
    %543 = vmatpush.bf16.msra.mxu0 %v520
    %544 = vmatmul.bf16.gmra.mxu0 %v287
    %v545 = vpop.f32.mrf.mxu0
    %v546 = vadd.f32 %v449, %v545
    %v547 = vpop.f32.mrf.mxu0
    %v548 = vadd.f32 %v451, %v547
    %549 = vmatmul.bf16.gmra.mxu0 %v288
    %v550 = vpop.f32.mrf.mxu0
    %v551 = vadd.f32 %v454, %v550
    %v552 = vpop.f32.mrf.mxu0
    %v553 = vadd.f32 %v456, %v552
    %554 = vmatmul.bf16.gmra.mxu0 %v289
    %v555 = vpop.f32.mrf.mxu0
    %v556 = vadd.f32 %v459, %v555
    %v557 = vpop.f32.mrf.mxu0
    %v558 = vadd.f32 %v461, %v557
    %559 = vmatmul.bf16.gmra.mxu0 %v290
    %v560 = vpop.f32.mrf.mxu0
    %v561 = vadd.f32 %v464, %v560
    %v562 = vpop.f32.mrf.mxu0
    %v563 = vadd.f32 %v466, %v562
    %564 = vmatmul.bf16.gmra.mxu0 %v291
    %v565 = vpop.f32.mrf.mxu0
    %v566 = vadd.f32 %v469, %v565
    %v567 = vpop.f32.mrf.mxu0
    %v568 = vadd.f32 %v471, %v567
    %569 = vmatmul.bf16.gmra.mxu0 %v292
    %v570 = vpop.f32.mrf.mxu0
    %v571 = vadd.f32 %v474, %v570
    %v572 = vpop.f32.mrf.mxu0
    %v573 = vadd.f32 %v476, %v572
    %574 = vmatmul.bf16.gmra.mxu0 %v293
    %v575 = vpop.f32.mrf.mxu0
    %v576 = vadd.f32 %v479, %v575
    %v577 = vpop.f32.mrf.mxu0
    %v578 = vadd.f32 %v481, %v577
    %579 = vmatmul.bf16.gmra.mxu0 %v294
    %v580 = vpop.f32.mrf.mxu0
    %v581 = vadd.f32 %v484, %v580
    %v582 = vpop.f32.mrf.mxu0
    %v583 = vadd.f32 %v486, %v582
    %584 = vdwg.mxu0
    %v585 = vld [vmem:[%s5] sm:$0x1]
    %v587 = vperm.slane %v585, 0
    %v589 = vadd.f32 %v546, %v587
    %v590 = vadd.f32 %v548, %v587
    %v591 = vadd.f32 %v551, %v587
    %v592 = vadd.f32 %v553, %v587
    %v593 = vadd.f32 %v556, %v587
    %v594 = vadd.f32 %v558, %v587
    %v595 = vadd.f32 %v561, %v587
    %v596 = vadd.f32 %v563, %v587
    %v597 = vadd.f32 %v566, %v587
    %v598 = vadd.f32 %v568, %v587
    %v599 = vadd.f32 %v571, %v587
    %v600 = vadd.f32 %v573, %v587
    %v601 = vadd.f32 %v576, %v587
    %v602 = vadd.f32 %v578, %v587
    %v603 = vadd.f32 %v581, %v587
    %v604 = vadd.f32 %v583, %v587
    %v605 = vmax.f32 %v589, 0.0
    %v606 = vmax.f32 %v590, 0.0
    %v607 = vmax.f32 %v591, 0.0
    %v608 = vmax.f32 %v592, 0.0
    %v609 = vmax.f32 %v593, 0.0
    %v610 = vmax.f32 %v594, 0.0
    %v611 = vmax.f32 %v595, 0.0
    %v612 = vmax.f32 %v596, 0.0
    %v613 = vmax.f32 %v597, 0.0
    %v614 = vmax.f32 %v598, 0.0
    %v615 = vmax.f32 %v599, 0.0
    %v616 = vmax.f32 %v600, 0.0
    %v617 = vmax.f32 %v601, 0.0
    %v618 = vmax.f32 %v602, 0.0
    %v619 = vmax.f32 %v603, 0.0
    %v620 = vmax.f32 %v604, 0.0
    %v621 = vpack.c.bf16 %v605, %v605
    %v622 = vpack.c.bf16 %v606, %v606
    %v623 = vpack.c.bf16 %v607, %v607
    %v624 = vpack.c.bf16 %v608, %v608
    %v625 = vpack.c.bf16 %v609, %v609
    %v626 = vpack.c.bf16 %v610, %v610
    %v627 = vpack.c.bf16 %v611, %v611
    %v628 = vpack.c.bf16 %v612, %v612
    %v629 = vpack.c.bf16 %v613, %v613
    %v630 = vpack.c.bf16 %v614, %v614
    %v631 = vpack.c.bf16 %v615, %v615
    %v632 = vpack.c.bf16 %v616, %v616
    %v633 = vpack.c.bf16 %v617, %v617
    %v634 = vpack.c.bf16 %v618, %v618
    %v635 = vpack.c.bf16 %v619, %v619
    %v636 = vpack.c.bf16 %v620, %v620
    %637 = vst [vmem:[%s6] sm:$0xf] %v621
    %638 = vst [vmem:[%s6 + $0x4] sm:$0xf] %v622
    %639 = vst [vmem:[%s6 + $0x8] sm:$0xf] %v623
    %640 = vst [vmem:[%s6 + $0xc] sm:$0xf] %v624
    %641 = vst [vmem:[%s6 + $0x10] sm:$0xf] %v625
    %642 = vst [vmem:[%s6 + $0x14] sm:$0xf] %v626
    %643 = vst [vmem:[%s6 + $0x18] sm:$0xf] %v627
    %644 = vst [vmem:[%s6 + $0x1c] sm:$0xf] %v628
    %645 = vst [vmem:[%s6 + $0x20] sm:$0xf] %v629
    %646 = vst [vmem:[%s6 + $0x24] sm:$0xf] %v630
    %647 = vst [vmem:[%s6 + $0x28] sm:$0xf] %v631
    %648 = vst [vmem:[%s6 + $0x2c] sm:$0xf] %v632
    %649 = vst [vmem:[%s6 + $0x30] sm:$0xf] %v633
    %650 = vst [vmem:[%s6 + $0x34] sm:$0xf] %v634
    %651 = vst [vmem:[%s6 + $0x38] sm:$0xf] %v635
    %652 = vst [vmem:[%s6 + $0x3c] sm:$0xf] %v636
  $region33: #{gnn_forward.2} parent=0 // pred_fallthru
    _
  // Predicated region
  $region34: #{gnn_forward.2} parent=0 // pred_check
    _
  $region35: #{gnn_forward.2} parent=0 // pred_check_branch
    %654 = sbr.rel (0) target = $region37
  $region36: #{gnn_forward.2} parent=0 // pred_region
    _
  $region37: #{gnn_forward.2} parent=0 // pred_fallthru
    _
  // Predicated region
  $region38: #{gnn_forward.2} parent=0 // pred_check
    _
  $region39: #{gnn_forward.2} parent=0 // pred_check_branch
    %656 = sbr.rel (0) target = $region41
  $region40: #{gnn_forward.2} parent=0 // pred_region
    _
  $region41: #{gnn_forward.2} parent=0 // pred_fallthru
    _

</llo_original>
